<compile_context>
chip_gen: v7x
topology: tpu7x:2x2x1
jax: 0.10.0
libtpu: 0.0.40
codegen_flags: <defaults>
</compile_context>

<pallas_src>
import functools

import jax
import jax.numpy as jnp
from jax.experimental import pallas as pl
from jax.experimental.pallas import tpu as pltpu

FILTER_SIZES = (2, 3, 4, 5)


def _textcnn_kernel(x_ref, wt_ref, mask_ref, ba_ref, wc_ref, bc_ref,
                    out_ref, feat_ref, *, S, E, NF, max_fsz, cb, mm_dtype):
    """Fused conv (tap-accumulated lane-dense matmuls) + masked online max-pool + linear."""
    Bt = x_ref.shape[0]
    n_chunks = Bt // cb
    Lc = cb * S                       # rows per chunk (multiple of 8 since S % 8 == 0)

    def chunk_body(c, carry):
        r0 = c * cb
        # (cb, S, E) -> (cb*S, E).  Rolls are done in f32 (32-bit sublane rotate is always
        # supported); each rolled copy is cast once to the matmul dtype for the MXU.
        x = x_ref[pl.ds(r0, cb)].astype(jnp.float32).reshape(Lc, E)
        acc = jnp.zeros((Lc, NF), jnp.float32)
        for k in range(max_fsz):
            # xk[r] = x[(r + k) % Lc]; wrapped / cross-batch rows only ever land on time
            # positions that the additive mask sends to -inf before the max-pool.
            xk = x if k == 0 else pltpu.roll(x, shift=Lc - k, axis=0)
            acc = acc + jnp.dot(xk.astype(mm_dtype), wt_ref[k],
                                preferred_element_type=jnp.float32)
        # Additive 0/-inf time mask (precomputed in the wrapper), then the online time max.
        acc = acc.reshape(cb, S, NF) + mask_ref[...][None]
        feat_ref[pl.ds(r0, cb), :] = jnp.max(acc, axis=1)
        return carry

    jax.lax.fori_loop(0, n_chunks, chunk_body, 0)

    # Conv bias + ReLU after the max (ReLU is monotone, bias constant over time) -> (Bt, NF).
    feat = jnp.maximum(feat_ref[...] + ba_ref[...], 0.0)

    # Classifier against the lane-dense zero-padded weight; store a lane-dense output slab.
    logits = jnp.dot(feat.astype(mm_dtype), wc_ref[...],
                     preferred_element_type=jnp.float32) + bc_ref[...]
    out_ref[...] = logits.astype(out_ref.dtype)


def _pick_batch_tile(B, S_pad, E, x_bytes, batch_tile):
    if batch_tile is not None:
        assert B % batch_tile == 0, "batch_tile must divide batch"
        return batch_tile
    # Keep the double-buffered x tile well under v5e's 16 MiB scoped-VMEM default
    # (and far inside v7x's 64 MiB physical VMEM per TensorCore).
    budget = 8 << 20
    per_row = 2 * S_pad * E * x_bytes            # double-buffered bytes per batch row
    cap = max(1, budget // per_row)
    cands = [t for t in range(8, B + 1, 8) if B % t == 0 and t <= cap]
    if not cands:
        return B                                 # small / non-multiple-of-8 batch: one step
    multi = [t for t in cands if B // t >= 2]    # >=2 steps keeps both v7x TCs busy
    if multi:
        even = [t for t in multi if (B // t) % 2 == 0]
        return max(even) if even else max(multi)
    return max(cands)


def _pick_chunk(batch_tile, S_pad):
    # Whole-batch-row chunks whose (cb*S, 128) f32 accumulator stays <= ~32 vregs.
    cb = max(1, min(batch_tile, 256 // S_pad))
    while batch_tile % cb:
        cb -= 1
    return cb


def textcnn_forward(x, conv_ws, conv_bs, wc, bc, *,
                    filter_sizes=FILTER_SIZES,
                    matmul_dtype=jnp.bfloat16,
                    cast_input=True,
                    batch_tile=None):
    B, S, E = x.shape
    F = conv_ws[0].shape[-1]
    n = len(filter_sizes)
    NF = n * F                              # 4*32 = 128 -> lane-dense conv/feature width
    C = wc.shape[-1]
    NC = 128 * pl.cdiv(C, 128)              # lane-dense padded classifier width
    max_fsz = max(filter_sizes)
    assert S >= max_fsz, "sequence shorter than largest filter"

    # Pad S to a multiple of 8 so the in-kernel (cb,S,E)->(cb*S,E) collapse is a pure relabel.
    S_pad = 8 * pl.cdiv(S, 8)
    if S_pad != S:
        x = jnp.pad(x, ((0, 0), (0, S_pad - S), (0, 0)))

    # x dominates HBM traffic — ship it in the matmul dtype (bf16 halves HBM bytes).
    if cast_input and x.dtype != matmul_dtype:
        x = x.astype(matmul_dtype)
    x_bytes = jnp.dtype(x.dtype).itemsize

    batch_tile = _pick_batch_tile(B, S_pad, E, x_bytes, batch_tile)
    cb = _pick_chunk(batch_tile, S_pad)

    # Fuse all filter banks along the output/lane axis; zero-pad missing taps so every tap-k
    # matmul uses one (E, NF) slab.  (Pad positions must stay exact zeros: bf16(0) == 0.)
    w_taps = jnp.zeros((max_fsz, E, NF), jnp.float32)
    for i, (fsz, w) in enumerate(zip(filter_sizes, conv_ws)):
        w_taps = w_taps.at[:fsz, :, i * F:(i + 1) * F].set(w.astype(jnp.float32))
    w_taps = w_taps.astype(matmul_dtype)
    b_all = jnp.concatenate([b.reshape(1, F) for b in conv_bs],
                            axis=1).astype(jnp.float32)                   # (1, NF)

    # Precomputed additive time-validity mask: 0 where t < S - fsz_i + 1, else -inf.
    # Also covers roll wrap-around contamination and the S padding rows.
    mask = jnp.full((S_pad, NF), -jnp.inf, dtype=jnp.float32)
    for i, fsz in enumerate(filter_sizes):
        mask = mask.at[:S - fsz + 1, i * F:(i + 1) * F].set(0.0)

    # Classifier weight/bias zero-padded to a lane-dense 128-wide output slab.
    wc_pad = jnp.zeros((NF, NC), jnp.float32).at[:, :C].set(
        wc.astype(jnp.float32)).astype(matmul_dtype)
    bc_pad = jnp.zeros((1, NC), jnp.float32).at[:, :C].set(
        bc.reshape(1, C).astype(jnp.float32))

    kernel = functools.partial(
        _textcnn_kernel, S=S_pad, E=E, NF=NF, max_fsz=max_fsz, cb=cb,
        mm_dtype=matmul_dtype)

    grid_spec = pltpu.PrefetchScalarGridSpec(
        num_scalar_prefetch=0,
        grid=(B // batch_tile,),
        in_specs=[
            pl.BlockSpec((batch_tile, S_pad, E), lambda b: (b, 0, 0)),   # pipelined x tiles
            pl.BlockSpec((max_fsz, E, NF), lambda b: (0, 0, 0)),         # fused conv taps
            pl.BlockSpec((S_pad, NF), lambda b: (0, 0)),                 # additive time mask
            pl.BlockSpec((1, NF), lambda b: (0, 0)),                     # fused conv bias
            pl.BlockSpec((NF, NC), lambda b: (0, 0)),                    # padded classifier W
            pl.BlockSpec((1, NC), lambda b: (0, 0)),                     # padded classifier b
        ],
        out_specs=pl.BlockSpec((batch_tile, NC), lambda b: (b, 0)),      # lane-dense output
        scratch_shapes=[pltpu.VMEM((batch_tile, NF), jnp.float32)],      # pooled features
    )

    out = pl.pallas_call(
        kernel,
        out_shape=jax.ShapeDtypeStruct((B, NC), jnp.float32),
        grid_spec=grid_spec,
        compiler_params=pltpu.CompilerParams(
            dimension_semantics=("parallel",)),                          # megacore on v7x
    )(x, w_taps, mask, b_all, wc_pad, bc_pad)
    return out[:, :C]


def textcnn_ref(x, conv_ws, conv_bs, wc, bc, filter_sizes=FILTER_SIZES):
    """Pure-JAX f32 reference mirroring the PyTorch forward."""
    feats = []
    for fsz, w, b in zip(filter_sizes, conv_ws, conv_bs):
        T = x.shape[1] - fsz + 1
        acc = jnp.zeros((x.shape[0], T, w.shape[-1]), jnp.float32)
        for k in range(fsz):
            acc = acc + jnp.einsum('bte,ef->btf', x[:, k:k + T, :], w[k])
        acc = jax.nn.relu(acc + b.reshape(1, 1, -1))
        feats.append(jnp.max(acc, axis=1))
    feat = jnp.concatenate(feats, axis=1)
    return feat @ wc + bc.reshape(1, -1)


if __name__ == "__main__":
    # Small shapes consistent with the module's forward.
    B, S, E = 16, 16, 32          # batch, seq_len, embedding_dim
    F = 32                        # filter_num
    C = 5                         # num_classes

    key = jax.random.PRNGKey(0)
    keys = jax.random.split(key, 2 * len(FILTER_SIZES) + 4)

    x = jax.random.normal(keys[0], (B, S, E), dtype=jnp.float32)
    conv_ws, conv_bs = [], []
    for i, fsz in enumerate(FILTER_SIZES):
        conv_ws.append(0.1 * jax.random.normal(keys[1 + 2 * i], (fsz, E, F),
                                               dtype=jnp.float32))
        conv_bs.append(0.1 * jax.random.normal(keys[2 + 2 * i], (F,),
                                               dtype=jnp.float32))
    wc = 0.1 * jax.random.normal(keys[-3], (len(FILTER_SIZES) * F, C),
                                 dtype=jnp.float32)
    bc = 0.1 * jax.random.normal(keys[-2], (C,), dtype=jnp.float32)

    ref = textcnn_ref(x, conv_ws, conv_bs, wc, bc)

    # Exact-parity path (f32 matmuls, f32 x) — matches the PyTorch module's semantics.
    out_f32 = jax.block_until_ready(
        textcnn_forward(x, conv_ws, conv_bs, wc, bc, matmul_dtype=jnp.float32))
    assert out_f32.shape == (B, C)
    assert jnp.allclose(out_f32, ref, atol=1e-4, rtol=1e-4), "f32 kernel mismatch vs reference"

    # Fast path: bf16 x transport + bf16 matmul inputs, f32 accumulate/elementwise.
    out_bf16 = jax.block_until_ready(
        textcnn_forward(x, conv_ws, conv_bs, wc, bc, matmul_dtype=jnp.bfloat16))
    assert out_bf16.shape == (B, C)
    assert jnp.allclose(out_bf16, ref, atol=1e-1, rtol=1e-1), "bf16 kernel sanity mismatch"

    # Odd seq-len + small batch: exercises the S-padding path and the single-step fallback.
    x2 = jax.random.normal(keys[-1], (4, 13, E), dtype=jnp.float32)
    ref2 = textcnn_ref(x2, conv_ws, conv_bs, wc, bc)
    out2 = jax.block_until_ready(
        textcnn_forward(x2, conv_ws, conv_bs, wc, bc, matmul_dtype=jnp.float32))
    assert jnp.allclose(out2, ref2, atol=1e-4, rtol=1e-4), "padded-S kernel mismatch"

    print("KERNEL_OK")
</pallas_src>

<mosaic_0001>
module attributes {stable_mosaic.version = 11 : i64} {
  func.func @_textcnn_kernel(%arg0: i32, %arg1: memref<8x16x32xf32, #tpu.memory_space<vmem>>, %arg2: memref<5x32x128xf32, #tpu.memory_space<vmem>>, %arg3: memref<16x128xf32, #tpu.memory_space<vmem>>, %arg4: memref<1x128xf32, #tpu.memory_space<vmem>>, %arg5: memref<128x128xf32, #tpu.memory_space<vmem>>, %arg6: memref<1x128xf32, #tpu.memory_space<vmem>>, %arg7: memref<8x128xf32, #tpu.memory_space<vmem>>, %arg8: memref<8x128xf32, #tpu.memory_space<vmem>>) attributes {dimension_semantics = [#tpu.dimension_semantics<parallel>], iteration_bounds = array<i64: 2>, scalar_prefetch = 0 : i64, scratch_operands = 1 : i64, tpu.core_type = #tpu.core_type<tc>, window_params = [{transform_indices = @transform_0, window_bounds = array<i64: 8, 16, 32>}, {pipeline_mode = #tpu.pipeline_mode<synchronous>, transform_indices = @transform_1, window_bounds = array<i64: 5, 32, 128>}, {pipeline_mode = #tpu.pipeline_mode<synchronous>, transform_indices = @transform_2, window_bounds = array<i64: 16, 128>}, {pipeline_mode = #tpu.pipeline_mode<synchronous>, transform_indices = @transform_3, window_bounds = array<i64: 1, 128>}, {pipeline_mode = #tpu.pipeline_mode<synchronous>, transform_indices = @transform_4, window_bounds = array<i64: 128, 128>}, {pipeline_mode = #tpu.pipeline_mode<synchronous>, transform_indices = @transform_5, window_bounds = array<i64: 1, 128>}, {transform_indices = @transform_6, window_bounds = array<i64: 8, 128>}]} {
    %c0_i32 = arith.constant 0 : i32
    %c8_i32 = arith.constant 8 : i32
    %0 = arith.muli %c0_i32, %c8_i32 : i32
    %1 = arith.index_cast %0 : i32 to index
    %c0 = arith.constant 0 : index
    %c0_0 = arith.constant 0 : index
    %2 = vector.load %arg1[%1, %c0, %c0_0] : memref<8x16x32xf32, #tpu.memory_space<vmem>>, vector<8x16x32xf32>
    %3 = vector.shape_cast %2 : vector<8x16x32xf32> to vector<128x32xf32>
    %cst = arith.constant 0.000000e+00 : f32
    %4 = vector.broadcast %cst : f32 to vector<128x128xf32>
    %c0_1 = arith.constant 0 : index
    %c0_2 = arith.constant 0 : index
    %c0_3 = arith.constant 0 : index
    %5 = vector.load %arg2[%c0_1, %c0_2, %c0_3] : memref<5x32x128xf32, #tpu.memory_space<vmem>>, vector<1x32x128xf32>
    %6 = vector.shape_cast %5 : vector<1x32x128xf32> to vector<32x128xf32>
    %cst_4 = arith.constant dense<0.000000e+00> : vector<128x128xf32>
    %7 = tpu.matmul %3, %6, %cst_4 {dimension_numbers = #tpu.dot_dimension_numbers<[1], [0], [0], [1], [0, 0, 1, 1], [], []>} : vector<128x32xf32>, vector<32x128xf32>, vector<128x128xf32> -> vector<128x128xf32>
    %8 = arith.addf %4, %7 : vector<128x128xf32>
    %c127_i32 = arith.constant 127 : i32
    %9 = tpu.dynamic_rotate %3 by %c127_i32 dim 0 : vector<128x32xf32>, i32 -> vector<128x32xf32>
    %c1 = arith.constant 1 : index
    %c0_5 = arith.constant 0 : index
    %c0_6 = arith.constant 0 : index
    %10 = vector.load %arg2[%c1, %c0_5, %c0_6] : memref<5x32x128xf32, #tpu.memory_space<vmem>>, vector<1x32x128xf32>
    %11 = vector.shape_cast %10 : vector<1x32x128xf32> to vector<32x128xf32>
    %cst_7 = arith.constant dense<0.000000e+00> : vector<128x128xf32>
    %12 = tpu.matmul %9, %11, %cst_7 {dimension_numbers = #tpu.dot_dimension_numbers<[1], [0], [0], [1], [0, 0, 1, 1], [], []>} : vector<128x32xf32>, vector<32x128xf32>, vector<128x128xf32> -> vector<128x128xf32>
    %13 = arith.addf %8, %12 : vector<128x128xf32>
    %c126_i32 = arith.constant 126 : i32
    %14 = tpu.dynamic_rotate %3 by %c126_i32 dim 0 : vector<128x32xf32>, i32 -> vector<128x32xf32>
    %c2 = arith.constant 2 : index
    %c0_8 = arith.constant 0 : index
    %c0_9 = arith.constant 0 : index
    %15 = vector.load %arg2[%c2, %c0_8, %c0_9] : memref<5x32x128xf32, #tpu.memory_space<vmem>>, vector<1x32x128xf32>
    %16 = vector.shape_cast %15 : vector<1x32x128xf32> to vector<32x128xf32>
    %cst_10 = arith.constant dense<0.000000e+00> : vector<128x128xf32>
    %17 = tpu.matmul %14, %16, %cst_10 {dimension_numbers = #tpu.dot_dimension_numbers<[1], [0], [0], [1], [0, 0, 1, 1], [], []>} : vector<128x32xf32>, vector<32x128xf32>, vector<128x128xf32> -> vector<128x128xf32>
    %18 = arith.addf %13, %17 : vector<128x128xf32>
    %c125_i32 = arith.constant 125 : i32
    %19 = tpu.dynamic_rotate %3 by %c125_i32 dim 0 : vector<128x32xf32>, i32 -> vector<128x32xf32>
    %c3 = arith.constant 3 : index
    %c0_11 = arith.constant 0 : index
    %c0_12 = arith.constant 0 : index
    %20 = vector.load %arg2[%c3, %c0_11, %c0_12] : memref<5x32x128xf32, #tpu.memory_space<vmem>>, vector<1x32x128xf32>
    %21 = vector.shape_cast %20 : vector<1x32x128xf32> to vector<32x128xf32>
    %cst_13 = arith.constant dense<0.000000e+00> : vector<128x128xf32>
    %22 = tpu.matmul %19, %21, %cst_13 {dimension_numbers = #tpu.dot_dimension_numbers<[1], [0], [0], [1], [0, 0, 1, 1], [], []>} : vector<128x32xf32>, vector<32x128xf32>, vector<128x128xf32> -> vector<128x128xf32>
    %23 = arith.addf %18, %22 : vector<128x128xf32>
    %c124_i32 = arith.constant 124 : i32
    %24 = tpu.dynamic_rotate %3 by %c124_i32 dim 0 : vector<128x32xf32>, i32 -> vector<128x32xf32>
    %c4 = arith.constant 4 : index
    %c0_14 = arith.constant 0 : index
    %c0_15 = arith.constant 0 : index
    %25 = vector.load %arg2[%c4, %c0_14, %c0_15] : memref<5x32x128xf32, #tpu.memory_space<vmem>>, vector<1x32x128xf32>
    %26 = vector.shape_cast %25 : vector<1x32x128xf32> to vector<32x128xf32>
    %cst_16 = arith.constant dense<0.000000e+00> : vector<128x128xf32>
    %27 = tpu.matmul %24, %26, %cst_16 {dimension_numbers = #tpu.dot_dimension_numbers<[1], [0], [0], [1], [0, 0, 1, 1], [], []>} : vector<128x32xf32>, vector<32x128xf32>, vector<128x128xf32> -> vector<128x128xf32>
    %28 = arith.addf %23, %27 : vector<128x128xf32>
    %29 = vector.shape_cast %28 : vector<128x128xf32> to vector<8x16x128xf32>
    %c0_17 = arith.constant 0 : index
    %c0_18 = arith.constant 0 : index
    %30 = vector.load %arg3[%c0_17, %c0_18] : memref<16x128xf32, #tpu.memory_space<vmem>>, vector<16x128xf32>
    %31 = vector.shape_cast %30 : vector<16x128xf32> to vector<1x16x128xf32>
    %32 = vector.broadcast %31 : vector<1x16x128xf32> to vector<8x16x128xf32>
    %33 = arith.addf %29, %32 : vector<8x16x128xf32>
    %cst_19 = arith.constant dense<0xFF800000> : vector<8x128xf32>
    %34 = vector.multi_reduction <maximumf>, %33, %cst_19 [1] : vector<8x16x128xf32> to vector<8x128xf32>
    %35 = arith.index_cast %0 : i32 to index
    %c0_20 = arith.constant 0 : index
    %36 = vector.load %arg8[%35, %c0_20] : memref<8x128xf32, #tpu.memory_space<vmem>>, vector<8x128xf32>
    tpu.vector_store %arg8[%35, %c0_20], %34 {strides = array<i32>} : memref<8x128xf32, #tpu.memory_space<vmem>>, vector<8x128xf32>,
    %c1_i32 = arith.constant 1 : i32
    %c0_21 = arith.constant 0 : index
    %c0_22 = arith.constant 0 : index
    %37 = vector.load %arg8[%c0_21, %c0_22] : memref<8x128xf32, #tpu.memory_space<vmem>>, vector<8x128xf32>
    %c0_23 = arith.constant 0 : index
    %c0_24 = arith.constant 0 : index
    %38 = vector.load %arg4[%c0_23, %c0_24] : memref<1x128xf32, #tpu.memory_space<vmem>>, vector<1x128xf32>
    %39 = vector.broadcast %38 : vector<1x128xf32> to vector<8x128xf32>
    %40 = arith.addf %37, %39 : vector<8x128xf32>
    %cst_25 = arith.constant 0.000000e+00 : f32
    %41 = vector.broadcast %cst_25 : f32 to vector<8x128xf32>
    %42 = arith.maximumf %40, %41 : vector<8x128xf32>
    %c0_26 = arith.constant 0 : index
    %c0_27 = arith.constant 0 : index
    %43 = vector.load %arg5[%c0_26, %c0_27] : memref<128x128xf32, #tpu.memory_space<vmem>>, vector<128x128xf32>
    %cst_28 = arith.constant dense<0.000000e+00> : vector<8x128xf32>
    %44 = tpu.matmul %42, %43, %cst_28 {dimension_numbers = #tpu.dot_dimension_numbers<[1], [0], [0], [1], [0, 0, 1, 1], [], []>} : vector<8x128xf32>, vector<128x128xf32>, vector<8x128xf32> -> vector<8x128xf32>
    %c0_29 = arith.constant 0 : index
    %c0_30 = arith.constant 0 : index
    %45 = vector.load %arg6[%c0_29, %c0_30] : memref<1x128xf32, #tpu.memory_space<vmem>>, vector<1x128xf32>
    %46 = vector.broadcast %45 : vector<1x128xf32> to vector<8x128xf32>
    %47 = arith.addf %44, %46 : vector<8x128xf32>
    %c0_31 = arith.constant 0 : index
    %c0_32 = arith.constant 0 : index
    %48 = vector.load %arg7[%c0_31, %c0_32] : memref<8x128xf32, #tpu.memory_space<vmem>>, vector<8x128xf32>
    tpu.vector_store %arg7[%c0_31, %c0_32], %47 {strides = array<i32>} : memref<8x128xf32, #tpu.memory_space<vmem>>, vector<8x128xf32>,
    return
  }
  func.func @transform_0(%arg0: i32) -> (i32, i32, i32) {
    %c0_i32 = arith.constant 0 : i32
    %c0_i32_0 = arith.constant 0 : i32
    %c0_i32_1 = arith.constant 0 : i32
    return %arg0, %c0_i32, %c0_i32_0 : i32, i32, i32
  }
  func.func @transform_1(%arg0: i32) -> (i32, i32, i32) {
    %c0_i32 = arith.constant 0 : i32
    %c0_i32_0 = arith.constant 0 : i32
    %c0_i32_1 = arith.constant 0 : i32
    %c0_i32_2 = arith.constant 0 : i32
    return %c0_i32, %c0_i32_0, %c0_i32_1 : i32, i32, i32
  }
  func.func @transform_2(%arg0: i32) -> (i32, i32) {
    %c0_i32 = arith.constant 0 : i32
    %c0_i32_0 = arith.constant 0 : i32
    %c0_i32_1 = arith.constant 0 : i32
    return %c0_i32, %c0_i32_0 : i32, i32
  }
  func.func @transform_3(%arg0: i32) -> (i32, i32) {
    %c0_i32 = arith.constant 0 : i32
    %c0_i32_0 = arith.constant 0 : i32
    %c0_i32_1 = arith.constant 0 : i32
    return %c0_i32, %c0_i32_0 : i32, i32
  }
  func.func @transform_4(%arg0: i32) -> (i32, i32) {
    %c0_i32 = arith.constant 0 : i32
    %c0_i32_0 = arith.constant 0 : i32
    %c0_i32_1 = arith.constant 0 : i32
    return %c0_i32, %c0_i32_0 : i32, i32
  }
  func.func @transform_5(%arg0: i32) -> (i32, i32) {
    %c0_i32 = arith.constant 0 : i32
    %c0_i32_0 = arith.constant 0 : i32
    %c0_i32_1 = arith.constant 0 : i32
    return %c0_i32, %c0_i32_0 : i32, i32
  }
  func.func @transform_6(%arg0: i32) -> (i32, i32) {
    %c0_i32 = arith.constant 0 : i32
    %c0_i32_0 = arith.constant 0 : i32
    return %arg0, %c0_i32 : i32, i32
  }
}

</mosaic_0001>

<llo_original>
// kernel: tpu_custom_call.1
$region0: #{tpu_custom_call.1}
  #allocation0 [shape = 'u32[]', space=smem, size = 0x4, offset = 0x4, fixed_abs, tag = 'smem constant byte address 0x4 - core index']
  #allocation1 [shape = 'u32[144,128]{1,0:T(1,128)}', space=vmem, size = 0x12000, scoped, tag = 'internal scratch']
  #allocation2 [shape = 'f32[8,128]{1,0:T(8,128)}', space=vmem, size = 0x1000, scoped, tag = 'scratch operand']
  %s0 = inlined_call_operand.hbm [shape: f32[16,16,32], index: 0, kind: input, shape index: {}]
  %s1 = inlined_call_operand.hbm [shape: f32[5,32,128], index: 1, kind: input, shape index: {}]
  %s2 = inlined_call_operand.hbm [shape: f32[16,128], index: 2, kind: input, shape index: {}]
  %s3 = inlined_call_operand.vmem [shape: f32[1,128], index: 3, kind: input, shape index: {}]
  %s4 = inlined_call_operand.hbm [shape: f32[128,128], index: 4, kind: input, shape index: {}]
  %s5 = inlined_call_operand.vmem [shape: f32[1,128], index: 5, kind: input, shape index: {}]
  %s6 = inlined_call_operand.hbm [shape: f32[16,128], index: 6, kind: output, shape index: {}]
  %s7 = sld [smem:[#allocation0]]
  $region73: #{tpu_custom_call.1} parent=0
    _
  %s9 = ssub.s32 1, %s7
  %s10 = scalar_select 0, %s9, %s7
  $region1: #{tpu_custom_call.1} parent=0
    #allocation3 [shape = 'u8[131072]{0}', space=vmem, size = 0x20000, scoped, tag = 'input window, operand 0']
    #allocation4 [shape = 's32[2]{0}', space=sflag, size = 0x8, scoped, tag = 'scoped memory for tpu_custom_call.1']
    #allocation5 [shape = 's32[2]{0}', space=sflag, size = 0x8, scoped, tag = 'scoped memory for tpu_custom_call.1']
    #allocation6 [shape = 'u8[81920]{0}', space=vmem, size = 0x14000, scoped, tag = 'input window, operand 1, single buffered']
    #allocation7 [shape = 's32[1]{0}', space=sflag, size = 0x4, scoped, tag = 'scoped memory for tpu_custom_call.1']
    #allocation8 [shape = 'u8[8192]{0}', space=vmem, size = 0x2000, scoped, tag = 'input window, operand 2, single buffered']
    #allocation9 [shape = 'u8[65536]{0}', space=vmem, size = 0x10000, scoped, tag = 'input window, operand 4, single buffered']
    #allocation10 [shape = 's32[1]{0}', space=sflag, size = 0x4, scoped, tag = 'scoped memory for tpu_custom_call.1']
    #allocation11 [shape = 'u8[8192]{0}', space=vmem, size = 0x2000, scoped, tag = 'output window, operand 0']
    %11 = vsyncpa [#allocation4], 0
    %s12 = scalar_lea.sflag [#allocation4], 1
    %13 = vsyncpa %s12, 0
    %14 = vsyncpa [#allocation7], 0
    %15 = vsyncpa [#allocation10], 0
    %16 = vsyncpa [#allocation5], 0
    %s17 = scalar_lea.sflag [#allocation5], 1
    %18 = vsyncpa %s17, 0
    loop: start=0, step=1, limit=4
    $region2: #{tpu_custom_call.1} parent=1 // loop_pre_header
      _
    $region3: #{tpu_custom_call.1} parent=1 // loop_header
      %s20 = sphi 0, %s24
      %p21 = scmp.ge.s32.totalorder %s20, 4
      %s30 = sphi 0, %s32
      %s33 = sphi 0, %s30
      %s34 = sphi 0, %s33
      %s50 = sphi 0, %s34
      %s54 = sphi 0, %s54
      %s56 = sphi 0, %s54
      %s57 = sphi 0, %s56
      %s71 = sphi 0, %s57
      %s75 = sphi 0, %s75
      %s77 = sphi 0, %s75
      %s78 = sphi 0, %s77
      %s92 = sphi 0, %s78
      %s96 = sphi 0, %s96
      %s98 = sphi 0, %s96
      %s99 = sphi 0, %s98
      %s113 = sphi 0, %s99
      %s117 = sphi 0, %s117
      %s119 = sphi 0, %s117
      %s120 = sphi 0, %s119
      %s134 = sphi 0, %s120
      %s138 = sphi 0, %s138
      %s140 = sphi 0, %s138
      %s141 = sphi 0, %s140
      %s155 = sphi 0, %s141
      %s161 = sphi 0, %s163
      %s164 = sphi 0, %s161
      %s165 = sphi 0, %s164
      %s181 = sphi 0, %s165
    $region4: #{tpu_custom_call.1} parent=1 // loop_header_branch
      %23 = sbr.rel (%p21) target = $region8
    $region5: #{tpu_custom_call.1} parent=1 // loop_body
      %s25 = ssub.s32 %s20, 1
      %s26 = ssub.s32 %s20, 2
      %s27 = sadd.s32 %s20, 1
      %s28 = ssub.s32 %s20, %s27
      %p29 = scmp.eq.s32.totalorder %s28, 0
      %s31 = sadd.s32 %s30, 1
      %s32 = scalar_select %p29, %s30, %s31
      %p35 = pneg %p29
      %p36 = scmp.eq.s32.totalorder %s20, 1
      %p37 = por %p35, %p36
      %p38 = scmp.ne.s32.totalorder %s30, %s33
      %p39 = scmp.eq.s32.totalorder %s20, 0
      %p40 = por %p38, %p39
      %p41 = scmp.ne.s32.totalorder %s30, %s33
      %p42 = scmp.eq.s32.totalorder %s25, 1
      %p43 = por %p41, %p42
      %p44 = scmp.ne.s32.totalorder %s33, %s34
      %p45 = scmp.eq.s32.totalorder %s25, 0
      %p46 = por %p44, %p45
      %p47 = scmp.ne.s32.totalorder %s33, %s34
      %p48 = scmp.eq.s32.totalorder %s26, 1
      %p49 = por %p47, %p48
      %p51 = scmp.ne.s32.totalorder %s34, %s50
      %p52 = scmp.eq.s32.totalorder %s26, 0
      %p53 = por %p51, %p52
      %s55 = sadd.s32 %s54, 1
      %p58 = scmp.eq.s32.totalorder %s20, 1
      %p59 = scmp.ne.s32.totalorder %s54, %s56
      %p60 = scmp.eq.s32.totalorder %s20, 0
      %p61 = por %p59, %p60
      %p62 = scmp.ne.s32.totalorder %s54, %s56
      %p63 = scmp.eq.s32.totalorder %s25, 1
      %p64 = por %p62, %p63
      %p65 = scmp.ne.s32.totalorder %s56, %s57
      %p66 = scmp.eq.s32.totalorder %s25, 0
      %p67 = por %p65, %p66
      %p68 = scmp.ne.s32.totalorder %s56, %s57
      %p69 = scmp.eq.s32.totalorder %s26, 1
      %p70 = por %p68, %p69
      %p72 = scmp.ne.s32.totalorder %s57, %s71
      %p73 = scmp.eq.s32.totalorder %s26, 0
      %p74 = por %p72, %p73
      %s76 = sadd.s32 %s75, 1
      %p79 = scmp.eq.s32.totalorder %s20, 1
      %p80 = scmp.ne.s32.totalorder %s75, %s77
      %p81 = scmp.eq.s32.totalorder %s20, 0
      %p82 = por %p80, %p81
      %p83 = scmp.ne.s32.totalorder %s75, %s77
      %p84 = scmp.eq.s32.totalorder %s25, 1
      %p85 = por %p83, %p84
      %p86 = scmp.ne.s32.totalorder %s77, %s78
      %p87 = scmp.eq.s32.totalorder %s25, 0
      %p88 = por %p86, %p87
      %p89 = scmp.ne.s32.totalorder %s77, %s78
      %p90 = scmp.eq.s32.totalorder %s26, 1
      %p91 = por %p89, %p90
      %p93 = scmp.ne.s32.totalorder %s78, %s92
      %p94 = scmp.eq.s32.totalorder %s26, 0
      %p95 = por %p93, %p94
      %s97 = sadd.s32 %s96, 1
      %p100 = scmp.eq.s32.totalorder %s20, 1
      %p101 = scmp.ne.s32.totalorder %s96, %s98
      %p102 = scmp.eq.s32.totalorder %s20, 0
      %p103 = por %p101, %p102
      %p104 = scmp.ne.s32.totalorder %s96, %s98
      %p105 = scmp.eq.s32.totalorder %s25, 1
      %p106 = por %p104, %p105
      %p107 = scmp.ne.s32.totalorder %s98, %s99
      %p108 = scmp.eq.s32.totalorder %s25, 0
      %p109 = por %p107, %p108
      %p110 = scmp.ne.s32.totalorder %s98, %s99
      %p111 = scmp.eq.s32.totalorder %s26, 1
      %p112 = por %p110, %p111
      %p114 = scmp.ne.s32.totalorder %s99, %s113
      %p115 = scmp.eq.s32.totalorder %s26, 0
      %p116 = por %p114, %p115
      %s118 = sadd.s32 %s117, 1
      %p121 = scmp.eq.s32.totalorder %s20, 1
      %p122 = scmp.ne.s32.totalorder %s117, %s119
      %p123 = scmp.eq.s32.totalorder %s20, 0
      %p124 = por %p122, %p123
      %p125 = scmp.ne.s32.totalorder %s117, %s119
      %p126 = scmp.eq.s32.totalorder %s25, 1
      %p127 = por %p125, %p126
      %p128 = scmp.ne.s32.totalorder %s119, %s120
      %p129 = scmp.eq.s32.totalorder %s25, 0
      %p130 = por %p128, %p129
      %p131 = scmp.ne.s32.totalorder %s119, %s120
      %p132 = scmp.eq.s32.totalorder %s26, 1
      %p133 = por %p131, %p132
      %p135 = scmp.ne.s32.totalorder %s120, %s134
      %p136 = scmp.eq.s32.totalorder %s26, 0
      %p137 = por %p135, %p136
      %s139 = sadd.s32 %s138, 1
      %p142 = scmp.eq.s32.totalorder %s20, 1
      %p143 = scmp.ne.s32.totalorder %s138, %s140
      %p144 = scmp.eq.s32.totalorder %s20, 0
      %p145 = por %p143, %p144
      %p146 = scmp.ne.s32.totalorder %s138, %s140
      %p147 = scmp.eq.s32.totalorder %s25, 1
      %p148 = por %p146, %p147
      %p149 = scmp.ne.s32.totalorder %s140, %s141
      %p150 = scmp.eq.s32.totalorder %s25, 0
      %p151 = por %p149, %p150
      %p152 = scmp.ne.s32.totalorder %s140, %s141
      %p153 = scmp.eq.s32.totalorder %s26, 1
      %p154 = por %p152, %p153
      %p156 = scmp.ne.s32.totalorder %s141, %s155
      %p157 = scmp.eq.s32.totalorder %s26, 0
      %p158 = por %p156, %p157
      %s159 = ssub.s32 %s20, %s27
      %p160 = scmp.eq.s32.totalorder %s159, 0
      %s162 = sadd.s32 %s161, 1
      %s163 = scalar_select %p160, %s161, %s162
      %p166 = pneg %p160
      %p167 = scmp.eq.s32.totalorder %s20, 1
      %p168 = por %p166, %p167
      %p169 = scmp.ne.s32.totalorder %s161, %s164
      %p170 = scmp.eq.s32.totalorder %s20, 0
      %p171 = por %p169, %p170
      %p172 = scmp.ne.s32.totalorder %s161, %s164
      %p173 = scmp.eq.s32.totalorder %s25, 1
      %p174 = por %p172, %p173
      %p175 = scmp.ne.s32.totalorder %s164, %s165
      %p176 = scmp.eq.s32.totalorder %s25, 0
      %p177 = por %p175, %p176
      %p178 = scmp.ne.s32.totalorder %s164, %s165
      %p179 = scmp.eq.s32.totalorder %s26, 1
      %p180 = por %p178, %p179
      %p182 = scmp.ne.s32.totalorder %s165, %s181
      %p183 = scmp.eq.s32.totalorder %s26, 0
      %p184 = por %p182, %p183
      %p185 = scmp.le.s32.totalorder 1, %s20
      %p186 = scmp.lt.s32.totalorder %s20, 3
      %p187 = pnand %p185, %p186
      %p188 = pneg %p187
      // Predicated region
      $region9: #{tpu_custom_call.1} parent=5 // pred_check
        _
      $region10: #{tpu_custom_call.1} parent=5 // pred_check_branch
        %190 = sbr.rel (%p187) target = $region12
      $region11: #{tpu_custom_call.1} parent=5 // pred_region
        %s191 = ssub.s32 %s20, 1
        // Predicated region
        $region13: #{tpu_custom_call.1} parent=11 // pred_check
          %p192 = pneg %p67
        $region14: #{tpu_custom_call.1} parent=11 // pred_check_branch
          %194 = sbr.rel (%p192) target = $region16
        $region15: #{tpu_custom_call.1} parent=11 // pred_region
          %s196 = ssub.s32 2560, 2560
          %197 = vsyncadd [#allocation7], %s196
          %s198 = sshll.u32 [#allocation6], 4
          %s199 = int_to_ptr.vmem [resolvable:$true] %s198
          %204 = dma.hbm_to_vmem [thread:$0]  %s1, 2560, %s199, [#allocation7], 128, 128, 8
        $region16: #{tpu_custom_call.1} parent=11 // pred_fallthru
          _
        // Predicated region
        $region17: #{tpu_custom_call.1} parent=11 // pred_check
          %p205 = pneg %p88
        $region18: #{tpu_custom_call.1} parent=11 // pred_check_branch
          %207 = sbr.rel (%p205) target = $region20
        $region19: #{tpu_custom_call.1} parent=11 // pred_region
          %s209 = ssub.s32 256, 256
          %210 = vsyncadd [#allocation7], %s209
          %s211 = sshll.u32 [#allocation8], 4
          %s212 = int_to_ptr.vmem [resolvable:$true] %s211
          %217 = dma.hbm_to_vmem [thread:$0]  %s2, 256, %s212, [#allocation7], 128, 128, 8
        $region20: #{tpu_custom_call.1} parent=11 // pred_fallthru
          _
        // Predicated region
        $region21: #{tpu_custom_call.1} parent=11 // pred_check
          %p218 = pneg %p109
        $region22: #{tpu_custom_call.1} parent=11 // pred_check_branch
          %220 = sbr.rel (%p218) target = $region24
        $region23: #{tpu_custom_call.1} parent=11 // pred_region
          _
        $region24: #{tpu_custom_call.1} parent=11 // pred_fallthru
          _
        // Predicated region
        $region25: #{tpu_custom_call.1} parent=11 // pred_check
          %p221 = pneg %p130
        $region26: #{tpu_custom_call.1} parent=11 // pred_check_branch
          %223 = sbr.rel (%p221) target = $region28
        $region27: #{tpu_custom_call.1} parent=11 // pred_region
          %s225 = ssub.s32 2048, 2048
          %226 = vsyncadd [#allocation10], %s225
          %s227 = sshll.u32 [#allocation9], 4
          %s228 = int_to_ptr.vmem [resolvable:$true] %s227
          %233 = dma.hbm_to_vmem [thread:$0]  %s4, 2048, %s228, [#allocation10], 128, 128, 8
        $region28: #{tpu_custom_call.1} parent=11 // pred_fallthru
          _
        // Predicated region
        $region29: #{tpu_custom_call.1} parent=11 // pred_check
          %p234 = pneg %p151
        $region30: #{tpu_custom_call.1} parent=11 // pred_check_branch
          %236 = sbr.rel (%p234) target = $region32
        $region31: #{tpu_custom_call.1} parent=11 // pred_region
          _
        $region32: #{tpu_custom_call.1} parent=11 // pred_fallthru
          _
      $region12: #{tpu_custom_call.1} parent=5 // pred_fallthru
        _
      %p237 = scmp.lt.s32.totalorder %s20, 2
      // Predicated region
      $region33: #{tpu_custom_call.1} parent=5 // pred_check
        %p238 = pneg %p237
      $region34: #{tpu_custom_call.1} parent=5 // pred_check_branch
        %240 = sbr.rel (%p238) target = $region36
      $region35: #{tpu_custom_call.1} parent=5 // pred_region
        // Predicated region
        $region37: #{tpu_custom_call.1} parent=35 // pred_check
          %p241 = pneg %p40
        $region38: #{tpu_custom_call.1} parent=35 // pred_check_branch
          %243 = sbr.rel (%p241) target = $region40
        $region39: #{tpu_custom_call.1} parent=35 // pred_region
          %s244 = sand.u32 %s30, 1
          %s245 = scalar_lea.sflag [#allocation4], %s244
          %s246 = sand.u32 %s30, 1
          %s247 = smul.addr %s246, 128
          %s248 = scalar_lea.vmem [#allocation3], %s247
          %s249 = smul.u32 8, %s20
          %s251 = ssub.s32 2048, 2048
          %252 = vsyncadd %s245, %s251
          %s253 = smul.addr %s249, 2
          %s254 = smul.addr %s253, 128
          %s255 = scalar_lea.hbm %s0, %s254
          %s256 = sshll.u32 %s248, 4
          %s257 = int_to_ptr.vmem [resolvable:$true] %s256
          %262 = dma.hbm_to_vmem [thread:$0]  %s255, 2048, %s257, %s245, 128, 128, 8
        $region40: #{tpu_custom_call.1} parent=35 // pred_fallthru
          _
      $region36: #{tpu_custom_call.1} parent=5 // pred_fallthru
        _
      %p263 = scmp.le.s32.totalorder 1, %s20
      %p264 = scmp.lt.s32.totalorder %s20, 3
      %p265 = pnand %p263, %p264
      %p266 = pneg %p265
      // Predicated region
      $region41: #{tpu_custom_call.1} parent=5 // pred_check
        _
      $region42: #{tpu_custom_call.1} parent=5 // pred_check_branch
        %268 = sbr.rel (%p265) target = $region44
      $region43: #{tpu_custom_call.1} parent=5 // pred_region
        %s269 = ssub.s32 %s20, 1
        %s270 = sand.u32 %s33, 1
        %s271 = scalar_lea.sflag [#allocation4], %s270
        %s272 = sand.u32 %s33, 1
        %s273 = smul.addr %s272, 128
        %s274 = scalar_lea.vmem [#allocation3], %s273
        // Predicated region
        $region45: #{tpu_custom_call.1} parent=43 // pred_check
          %p275 = pneg %p46
        $region46: #{tpu_custom_call.1} parent=43 // pred_check_branch
          %277 = sbr.rel (%p275) target = $region48
        $region47: #{tpu_custom_call.1} parent=43 // pred_region
          %278 = dma.done %s271, 2048
        $region48: #{tpu_custom_call.1} parent=43 // pred_fallthru
          _
        // Predicated region
        $region49: #{tpu_custom_call.1} parent=43 // pred_check
          %p279 = pneg %p67
        $region50: #{tpu_custom_call.1} parent=43 // pred_check_branch
          %281 = sbr.rel (%p279) target = $region52
        $region51: #{tpu_custom_call.1} parent=43 // pred_region
          %282 = dma.done [#allocation7], 2560
        $region52: #{tpu_custom_call.1} parent=43 // pred_fallthru
          _
        // Predicated region
        $region53: #{tpu_custom_call.1} parent=43 // pred_check
          %p283 = pneg %p88
        $region54: #{tpu_custom_call.1} parent=43 // pred_check_branch
          %285 = sbr.rel (%p283) target = $region56
        $region55: #{tpu_custom_call.1} parent=43 // pred_region
          %286 = dma.done [#allocation7], 256
        $region56: #{tpu_custom_call.1} parent=43 // pred_fallthru
          _
        // Predicated region
        $region57: #{tpu_custom_call.1} parent=43 // pred_check
          %p287 = pneg %p130
        $region58: #{tpu_custom_call.1} parent=43 // pred_check_branch
          %289 = sbr.rel (%p287) target = $region60
        $region59: #{tpu_custom_call.1} parent=43 // pred_region
          %290 = dma.done [#allocation10], 2048
        $region60: #{tpu_custom_call.1} parent=43 // pred_fallthru
          _
        %s291 = sand.u32 %s33, 1
        %s292 = scalar_lea.sflag [#allocation4], %s291
        %s293 = sand.u32 %s33, 1
        %s294 = smul.addr %s293, 128
        %s295 = scalar_lea.vmem [#allocation3], %s294
        %p296 = pneg %p46
        %p297 = pneg %p43
        %p298 = pneg %p67
        %p299 = pneg %p64
        %p300 = pneg %p88
        %p301 = pneg %p85
        %p302 = pneg %p109
        %p303 = pneg %p106
        %p304 = pneg %p130
        %p305 = pneg %p127
        %p306 = pneg %p151
        %p307 = pneg %p148
        %p308 = pneg %p177
        %p309 = pneg %p174
        %s310 = sand.u32 %s164, 1
        %s311 = scalar_lea.sflag [#allocation5], %s310
        %s312 = sand.u32 %s164, 1
        %s313 = smul.addr %s312, 8
        %s314 = scalar_lea.vmem [#allocation11], %s313
        %s315 = smul.u32 8, %s25
        %v316 = vld [vmem:[%s274] sm:$0xff]
        %v317 = vld [vmem:[%s274 + $0x8] sm:$0xff]
        %v318 = vld [vmem:[%s274 + $0x10] sm:$0xff]
        %v319 = vld [vmem:[%s274 + $0x18] sm:$0xff]
        %v320 = vld [vmem:[%s274 + $0x20] sm:$0xff]
        %v321 = vld [vmem:[%s274 + $0x28] sm:$0xff]
        %v322 = vld [vmem:[%s274 + $0x30] sm:$0xff]
        %v323 = vld [vmem:[%s274 + $0x38] sm:$0xff]
        %v324 = vld [vmem:[%s274 + $0x40] sm:$0xff]
        %v325 = vld [vmem:[%s274 + $0x48] sm:$0xff]
        %v326 = vld [vmem:[%s274 + $0x50] sm:$0xff]
        %v327 = vld [vmem:[%s274 + $0x58] sm:$0xff]
        %v328 = vld [vmem:[%s274 + $0x60] sm:$0xff]
        %v329 = vld [vmem:[%s274 + $0x68] sm:$0xff]
        %v330 = vld [vmem:[%s274 + $0x70] sm:$0xff]
        %v331 = vld [vmem:[%s274 + $0x78] sm:$0xff]
        %v332 = vld [vmem:[#allocation6] sm:$0xff]
        %v333 = vld [vmem:[#allocation6 + $0x8] sm:$0xff]
        %v334 = vld [vmem:[#allocation6 + $0x10] sm:$0xff]
        %v335 = vld [vmem:[#allocation6 + $0x18] sm:$0xff]
        %v336 = vrot.slane %v316, 1
        %v337 = vrot.slane %v317, 1
        %v338 = vrot.slane %v318, 1
        %v339 = vrot.slane %v319, 1
        %v340 = vrot.slane %v320, 1
        %v341 = vrot.slane %v321, 1
        %v342 = vrot.slane %v322, 1
        %v343 = vrot.slane %v323, 1
        %v344 = vrot.slane %v324, 1
        %v345 = vrot.slane %v325, 1
        %v346 = vrot.slane %v326, 1
        %v347 = vrot.slane %v327, 1
        %v348 = vrot.slane %v328, 1
        %v349 = vrot.slane %v329, 1
        %v350 = vrot.slane %v330, 1
        %v351 = vrot.slane %v331, 1
        %v352 = vlaneseq
        %v353 = vshrl.u32 %v352, 7
        %vm354 = vcmp.lt.s32.totalorder %v353, 7
        %v355 = vsel %vm354, %v350, %v351
        %v356 = vsel %vm354, %v349, %v350
        %v357 = vsel %vm354, %v348, %v349
        %v358 = vsel %vm354, %v347, %v348
        %v359 = vsel %vm354, %v346, %v347
        %v360 = vsel %vm354, %v345, %v346
        %v361 = vsel %vm354, %v344, %v345
        %v362 = vsel %vm354, %v343, %v344
        %v363 = vsel %vm354, %v342, %v343
        %v364 = vsel %vm354, %v341, %v342
        %v365 = vsel %vm354, %v340, %v341
        %v366 = vsel %vm354, %v339, %v340
        %v367 = vsel %vm354, %v338, %v339
        %v368 = vsel %vm354, %v337, %v338
        %v369 = vsel %vm354, %v336, %v337
        %v370 = vsel %vm354, %v351, %v336
        %s371 = scalar_lea.vmem [#allocation6], 32
        %v372 = vld [vmem:[%s371] sm:$0xff]
        %v373 = vld [vmem:[%s371 + $0x8] sm:$0xff]
        %v374 = vld [vmem:[%s371 + $0x10] sm:$0xff]
        %v375 = vld [vmem:[%s371 + $0x18] sm:$0xff]
        %vm376 = vcmask 261120
        %v378 = vsel %vm376, %v369, 0
        %v381 = vsel %vm376, %v368, 0
        %v384 = vsel %vm376, %v367, 0
        %v387 = vsel %vm376, %v366, 0
        %v390 = vsel %vm376, %v365, 0
        %v393 = vsel %vm376, %v364, 0
        %v396 = vsel %vm376, %v363, 0
        %v399 = vsel %vm376, %v362, 0
        %v402 = vsel %vm376, %v361, 0
        %v405 = vsel %vm376, %v360, 0
        %v408 = vsel %vm376, %v359, 0
        %v411 = vsel %vm376, %v358, 0
        %v414 = vsel %vm376, %v357, 0
        %v417 = vsel %vm376, %v356, 0
        %v420 = vsel %vm376, %v355, 0
        %v423 = vsel %vm376, %v370, 0
        %425 = vmatprep.subr.mxu0 0.0
        %426 = vmatpush1.msra.mxu0 %v372
        %427 = vmatprep.subr.mxu0 0.0
        %428 = vmatpush1.msra.mxu0 %v373
        %429 = vmatprep.subr.mxu0 0.0
        %430 = vmatpush1.msra.mxu0 %v374
        %431 = vmatprep.subr.mxu0 0.0
        %432 = vmatpush1.msra.mxu0 %v375
        %433 = vmatprep.subr.mxu0 0.0
        %434 = vmatpush1.msra.mxu0 0.0
        %435 = vmatprep.subr.mxu0 0.0
        %436 = vmatpush1.msra.mxu0 0.0
        %437 = vmatprep.subr.mxu0 0.0
        %438 = vmatpush1.msra.mxu0 0.0
        %439 = vmatprep.subr.mxu0 0.0
        %440 = vmatpush1.msra.mxu0 0.0
        %441 = vmatprep.subr.mxu0 0.0
        %442 = vmatpush1.msra.mxu0 0.0
        %443 = vmatprep.subr.mxu0 0.0
        %444 = vmatpush1.msra.mxu0 0.0
        %445 = vmatprep.subr.mxu0 0.0
        %446 = vmatpush1.msra.mxu0 0.0
        %447 = vmatprep.subr.mxu0 0.0
        %448 = vmatpush1.msra.mxu0 0.0
        %449 = vmatprep.subr.mxu0 0.0
        %450 = vmatpush1.msra.mxu0 0.0
        %451 = vmatprep.subr.mxu0 0.0
        %452 = vmatpush1.msra.mxu0 0.0
        %453 = vmatprep.subr.mxu0 0.0
        %454 = vmatpush1.msra.mxu0 0.0
        %455 = vmatprep.subr.mxu0 0.0
        %456 = vmatpush1.msra.mxu0 0.0
        %457 = vmatprep.subr.mxu0 0.0
        %458 = vmatpush1.msra.mxu0 0.0
        %459 = vmatprep.subr.mxu0 0.0
        %460 = vmatpush1.msra.mxu0 0.0
        %461 = vmatprep.subr.mxu0 0.0
        %462 = vmatpush1.msra.mxu0 0.0
        %463 = vmatprep.subr.mxu0 0.0
        %464 = vmatpush1.msra.mxu0 0.0
        %465 = vmatprep.subr.mxu0 0.0
        %466 = vmatpush1.msra.mxu0 0.0
        %467 = vmatprep.subr.mxu0 0.0
        %468 = vmatpush1.msra.mxu0 0.0
        %469 = vmatprep.subr.mxu0 0.0
        %470 = vmatpush1.msra.mxu0 0.0
        %471 = vmatprep.subr.mxu0 0.0
        %472 = vmatpush1.msra.mxu0 0.0
        %473 = vmatprep.subr.mxu0 0.0
        %474 = vmatpush1.msra.mxu0 0.0
        %475 = vmatprep.subr.mxu0 0.0
        %476 = vmatpush1.msra.mxu0 0.0
        %477 = vmatprep.subr.mxu0 0.0
        %478 = vmatpush1.msra.mxu0 0.0
        %479 = vmatprep.subr.mxu0 0.0
        %480 = vmatpush1.msra.mxu0 0.0
        %481 = vmatprep.subr.mxu0 0.0
        %482 = vmatpush1.msra.mxu0 0.0
        %483 = vmatprep.subr.mxu0 0.0
        %484 = vmatpush1.msra.mxu0 0.0
        %485 = vmatprep.subr.mxu0 0.0
        %486 = vmatpush1.msra.mxu0 0.0
        %487 = vmatprep.subr.mxu0 0.0
        %488 = vmatpush1.msra.mxu0 0.0
        %489 = vmatprep.mubr.f32.mxu0 0.0
        %490 = vmatmul.mubr.f32.gmra.mrb[0].mxu0 %v378
        %v491 = vpop.f32.mrb[0].mxu0
        %v492 = vadd.f32 0.0, %v491
        %v493 = vpop.f32.mrb[0].mxu0
        %494 = vmatprep.mubr.f32.mxu0 0.0
        %495 = vmatmul.mubr.f32.gmra.mrb[0].mxu0 %v381
        %v496 = vpop.f32.mrb[0].mxu0
        %v497 = vadd.f32 0.0, %v496
        %v498 = vpop.f32.mrb[0].mxu0
        %499 = vmatprep.mubr.f32.mxu0 0.0
        %500 = vmatmul.mubr.f32.gmra.mrb[0].mxu0 %v384
        %v501 = vpop.f32.mrb[0].mxu0
        %v502 = vadd.f32 0.0, %v501
        %v503 = vpop.f32.mrb[0].mxu0
        %504 = vmatprep.mubr.f32.mxu0 0.0
        %505 = vmatmul.mubr.f32.gmra.mrb[0].mxu0 %v387
        %v506 = vpop.f32.mrb[0].mxu0
        %v507 = vadd.f32 0.0, %v506
        %v508 = vpop.f32.mrb[0].mxu0
        %509 = vmatprep.mubr.f32.mxu0 0.0
        %510 = vmatmul.mubr.f32.gmra.mrb[0].mxu0 %v390
        %v511 = vpop.f32.mrb[0].mxu0
        %v512 = vadd.f32 0.0, %v511
        %v513 = vpop.f32.mrb[0].mxu0
        %514 = vmatprep.mubr.f32.mxu0 0.0
        %515 = vmatmul.mubr.f32.gmra.mrb[0].mxu0 %v393
        %v516 = vpop.f32.mrb[0].mxu0
        %v517 = vadd.f32 0.0, %v516
        %v518 = vpop.f32.mrb[0].mxu0
        %519 = vmatprep.mubr.f32.mxu0 0.0
        %520 = vmatmul.mubr.f32.gmra.mrb[0].mxu0 %v396
        %v521 = vpop.f32.mrb[0].mxu0
        %v522 = vadd.f32 0.0, %v521
        %v523 = vpop.f32.mrb[0].mxu0
        %524 = vmatprep.mubr.f32.mxu0 0.0
        %525 = vmatmul.mubr.f32.gmra.mrb[0].mxu0 %v399
        %v526 = vpop.f32.mrb[0].mxu0
        %v527 = vadd.f32 0.0, %v526
        %v528 = vpop.f32.mrb[0].mxu0
        %529 = vmatprep.mubr.f32.mxu0 0.0
        %530 = vmatmul.mubr.f32.gmra.mrb[0].mxu0 %v402
        %v531 = vpop.f32.mrb[0].mxu0
        %v532 = vadd.f32 0.0, %v531
        %v533 = vpop.f32.mrb[0].mxu0
        %534 = vmatprep.mubr.f32.mxu0 0.0
        %535 = vmatmul.mubr.f32.gmra.mrb[0].mxu0 %v405
        %v536 = vpop.f32.mrb[0].mxu0
        %v537 = vadd.f32 0.0, %v536
        %v538 = vpop.f32.mrb[0].mxu0
        %539 = vmatprep.mubr.f32.mxu0 0.0
        %540 = vmatmul.mubr.f32.gmra.mrb[0].mxu0 %v408
        %v541 = vpop.f32.mrb[0].mxu0
        %v542 = vadd.f32 0.0, %v541
        %v543 = vpop.f32.mrb[0].mxu0
        %544 = vmatprep.mubr.f32.mxu0 0.0
        %545 = vmatmul.mubr.f32.gmra.mrb[0].mxu0 %v411
        %v546 = vpop.f32.mrb[0].mxu0
        %v547 = vadd.f32 0.0, %v546
        %v548 = vpop.f32.mrb[0].mxu0
        %549 = vmatprep.mubr.f32.mxu0 0.0
        %550 = vmatmul.mubr.f32.gmra.mrb[0].mxu0 %v414
        %v551 = vpop.f32.mrb[0].mxu0
        %v552 = vadd.f32 0.0, %v551
        %v553 = vpop.f32.mrb[0].mxu0
        %554 = vmatprep.mubr.f32.mxu0 0.0
        %555 = vmatmul.mubr.f32.gmra.mrb[0].mxu0 %v417
        %v556 = vpop.f32.mrb[0].mxu0
        %v557 = vadd.f32 0.0, %v556
        %v558 = vpop.f32.mrb[0].mxu0
        %559 = vmatprep.mubr.f32.mxu0 0.0
        %560 = vmatmul.mubr.f32.gmra.mrb[0].mxu0 %v420
        %v561 = vpop.f32.mrb[0].mxu0
        %v562 = vadd.f32 0.0, %v561
        %v563 = vpop.f32.mrb[0].mxu0
        %564 = vmatprep.mubr.f32.mxu0 0.0
        %565 = vmatmul.mubr.f32.gmra.mrb[0].mxu0 %v423
        %v566 = vpop.f32.mrb[0].mxu0
        %v567 = vadd.f32 0.0, %v566
        %v568 = vpop.f32.mrb[0].mxu0
        %569 = vdwg.mxu0
        %v571 = vsel %vm376, %v316, 0
        %v574 = vsel %vm376, %v317, 0
        %v577 = vsel %vm376, %v318, 0
        %v580 = vsel %vm376, %v319, 0
        %v583 = vsel %vm376, %v320, 0
        %v586 = vsel %vm376, %v321, 0
        %v589 = vsel %vm376, %v322, 0
        %v592 = vsel %vm376, %v323, 0
        %v595 = vsel %vm376, %v324, 0
        %v598 = vsel %vm376, %v325, 0
        %v601 = vsel %vm376, %v326, 0
        %v604 = vsel %vm376, %v327, 0
        %v607 = vsel %vm376, %v328, 0
        %v610 = vsel %vm376, %v329, 0
        %v613 = vsel %vm376, %v330, 0
        %v616 = vsel %vm376, %v331, 0
        %618 = vmatprep.subr.mxu0 0.0
        %619 = vmatpush1.msra.mxu0 %v332
        %620 = vmatprep.subr.mxu0 0.0
        %621 = vmatpush1.msra.mxu0 %v333
        %622 = vmatprep.subr.mxu0 0.0
        %623 = vmatpush1.msra.mxu0 %v334
        %624 = vmatprep.subr.mxu0 0.0
        %625 = vmatpush1.msra.mxu0 %v335
        %626 = vmatprep.subr.mxu0 0.0
        %627 = vmatpush1.msra.mxu0 0.0
        %628 = vmatprep.subr.mxu0 0.0
        %629 = vmatpush1.msra.mxu0 0.0
        %630 = vmatprep.subr.mxu0 0.0
        %631 = vmatpush1.msra.mxu0 0.0
        %632 = vmatprep.subr.mxu0 0.0
        %633 = vmatpush1.msra.mxu0 0.0
        %634 = vmatprep.subr.mxu0 0.0
        %635 = vmatpush1.msra.mxu0 0.0
        %636 = vmatprep.subr.mxu0 0.0
        %637 = vmatpush1.msra.mxu0 0.0
        %638 = vmatprep.subr.mxu0 0.0
        %639 = vmatpush1.msra.mxu0 0.0
        %640 = vmatprep.subr.mxu0 0.0
        %641 = vmatpush1.msra.mxu0 0.0
        %642 = vmatprep.subr.mxu0 0.0
        %643 = vmatpush1.msra.mxu0 0.0
        %644 = vmatprep.subr.mxu0 0.0
        %645 = vmatpush1.msra.mxu0 0.0
        %646 = vmatprep.subr.mxu0 0.0
        %647 = vmatpush1.msra.mxu0 0.0
        %648 = vmatprep.subr.mxu0 0.0
        %649 = vmatpush1.msra.mxu0 0.0
        %650 = vmatprep.subr.mxu0 0.0
        %651 = vmatpush1.msra.mxu0 0.0
        %652 = vmatprep.subr.mxu0 0.0
        %653 = vmatpush1.msra.mxu0 0.0
        %654 = vmatprep.subr.mxu0 0.0
        %655 = vmatpush1.msra.mxu0 0.0
        %656 = vmatprep.subr.mxu0 0.0
        %657 = vmatpush1.msra.mxu0 0.0
        %658 = vmatprep.subr.mxu0 0.0
        %659 = vmatpush1.msra.mxu0 0.0
        %660 = vmatprep.subr.mxu0 0.0
        %661 = vmatpush1.msra.mxu0 0.0
        %662 = vmatprep.subr.mxu0 0.0
        %663 = vmatpush1.msra.mxu0 0.0
        %664 = vmatprep.subr.mxu0 0.0
        %665 = vmatpush1.msra.mxu0 0.0
        %666 = vmatprep.subr.mxu0 0.0
        %667 = vmatpush1.msra.mxu0 0.0
        %668 = vmatprep.subr.mxu0 0.0
        %669 = vmatpush1.msra.mxu0 0.0
        %670 = vmatprep.subr.mxu0 0.0
        %671 = vmatpush1.msra.mxu0 0.0
        %672 = vmatprep.subr.mxu0 0.0
        %673 = vmatpush1.msra.mxu0 0.0
        %674 = vmatprep.subr.mxu0 0.0
        %675 = vmatpush1.msra.mxu0 0.0
        %676 = vmatprep.subr.mxu0 0.0
        %677 = vmatpush1.msra.mxu0 0.0
        %678 = vmatprep.subr.mxu0 0.0
        %679 = vmatpush1.msra.mxu0 0.0
        %680 = vmatprep.subr.mxu0 0.0
        %681 = vmatpush1.msra.mxu0 0.0
        %682 = vmatprep.mubr.f32.mxu0 0.0
        %683 = vmatmul.mubr.f32.gmra.mrb[0].mxu0 %v571
        %v684 = vpop.f32.mrb[0].mxu0
        %v685 = vadd.f32 %v492, %v684
        %v686 = vpop.f32.mrb[0].mxu0
        %687 = vmatprep.mubr.f32.mxu0 0.0
        %688 = vmatmul.mubr.f32.gmra.mrb[0].mxu0 %v574
        %v689 = vpop.f32.mrb[0].mxu0
        %v690 = vadd.f32 %v497, %v689
        %v691 = vpop.f32.mrb[0].mxu0
        %692 = vmatprep.mubr.f32.mxu0 0.0
        %693 = vmatmul.mubr.f32.gmra.mrb[0].mxu0 %v577
        %v694 = vpop.f32.mrb[0].mxu0
        %v695 = vadd.f32 %v502, %v694
        %v696 = vpop.f32.mrb[0].mxu0
        %697 = vmatprep.mubr.f32.mxu0 0.0
        %698 = vmatmul.mubr.f32.gmra.mrb[0].mxu0 %v580
        %v699 = vpop.f32.mrb[0].mxu0
        %v700 = vadd.f32 %v507, %v699
        %v701 = vpop.f32.mrb[0].mxu0
        %702 = vmatprep.mubr.f32.mxu0 0.0
        %703 = vmatmul.mubr.f32.gmra.mrb[0].mxu0 %v583
        %v704 = vpop.f32.mrb[0].mxu0
        %v705 = vadd.f32 %v512, %v704
        %v706 = vpop.f32.mrb[0].mxu0
        %707 = vmatprep.mubr.f32.mxu0 0.0
        %708 = vmatmul.mubr.f32.gmra.mrb[0].mxu0 %v586
        %v709 = vpop.f32.mrb[0].mxu0
        %v710 = vadd.f32 %v517, %v709
        %v711 = vpop.f32.mrb[0].mxu0
        %712 = vmatprep.mubr.f32.mxu0 0.0
        %713 = vmatmul.mubr.f32.gmra.mrb[0].mxu0 %v589
        %v714 = vpop.f32.mrb[0].mxu0
        %v715 = vadd.f32 %v522, %v714
        %v716 = vpop.f32.mrb[0].mxu0
        %717 = vmatprep.mubr.f32.mxu0 0.0
        %718 = vmatmul.mubr.f32.gmra.mrb[0].mxu0 %v592
        %v719 = vpop.f32.mrb[0].mxu0
        %v720 = vadd.f32 %v527, %v719
        %v721 = vpop.f32.mrb[0].mxu0
        %722 = vmatprep.mubr.f32.mxu0 0.0
        %723 = vmatmul.mubr.f32.gmra.mrb[0].mxu0 %v595
        %v724 = vpop.f32.mrb[0].mxu0
        %v725 = vadd.f32 %v532, %v724
        %v726 = vpop.f32.mrb[0].mxu0
        %727 = vmatprep.mubr.f32.mxu0 0.0
        %728 = vmatmul.mubr.f32.gmra.mrb[0].mxu0 %v598
        %v729 = vpop.f32.mrb[0].mxu0
        %v730 = vadd.f32 %v537, %v729
        %v731 = vpop.f32.mrb[0].mxu0
        %732 = vmatprep.mubr.f32.mxu0 0.0
        %733 = vmatmul.mubr.f32.gmra.mrb[0].mxu0 %v601
        %v734 = vpop.f32.mrb[0].mxu0
        %v735 = vadd.f32 %v542, %v734
        %v736 = vpop.f32.mrb[0].mxu0
        %737 = vmatprep.mubr.f32.mxu0 0.0
        %738 = vmatmul.mubr.f32.gmra.mrb[0].mxu0 %v604
        %v739 = vpop.f32.mrb[0].mxu0
        %v740 = vadd.f32 %v547, %v739
        %v741 = vpop.f32.mrb[0].mxu0
        %742 = vmatprep.mubr.f32.mxu0 0.0
        %743 = vmatmul.mubr.f32.gmra.mrb[0].mxu0 %v607
        %v744 = vpop.f32.mrb[0].mxu0
        %v745 = vadd.f32 %v552, %v744
        %v746 = vpop.f32.mrb[0].mxu0
        %747 = vmatprep.mubr.f32.mxu0 0.0
        %748 = vmatmul.mubr.f32.gmra.mrb[0].mxu0 %v610
        %v749 = vpop.f32.mrb[0].mxu0
        %v750 = vadd.f32 %v557, %v749
        %v751 = vpop.f32.mrb[0].mxu0
        %752 = vmatprep.mubr.f32.mxu0 0.0
        %753 = vmatmul.mubr.f32.gmra.mrb[0].mxu0 %v613
        %v754 = vpop.f32.mrb[0].mxu0
        %v755 = vadd.f32 %v562, %v754
        %v756 = vpop.f32.mrb[0].mxu0
        %757 = vmatprep.mubr.f32.mxu0 0.0
        %758 = vmatmul.mubr.f32.gmra.mrb[0].mxu0 %v616
        %v759 = vpop.f32.mrb[0].mxu0
        %v760 = vadd.f32 %v567, %v759
        %v761 = vpop.f32.mrb[0].mxu0
        %762 = vdwg.mxu0
        %v763 = vrot.slane %v316, 2
        %v764 = vrot.slane %v317, 2
        %v765 = vrot.slane %v318, 2
        %v766 = vrot.slane %v319, 2
        %v767 = vrot.slane %v320, 2
        %v768 = vrot.slane %v321, 2
        %v769 = vrot.slane %v322, 2
        %v770 = vrot.slane %v323, 2
        %v771 = vrot.slane %v324, 2
        %v772 = vrot.slane %v325, 2
        %v773 = vrot.slane %v326, 2
        %v774 = vrot.slane %v327, 2
        %v775 = vrot.slane %v328, 2
        %v776 = vrot.slane %v329, 2
        %v777 = vrot.slane %v330, 2
        %v778 = vrot.slane %v331, 2
        %vm779 = vcmp.lt.s32.totalorder %v353, 6
        %v780 = vsel %vm779, %v777, %v778
        %v781 = vsel %vm779, %v776, %v777
        %v782 = vsel %vm779, %v775, %v776
        %v783 = vsel %vm779, %v774, %v775
        %v784 = vsel %vm779, %v773, %v774
        %v785 = vsel %vm779, %v772, %v773
        %v786 = vsel %vm779, %v771, %v772
        %v787 = vsel %vm779, %v770, %v771
        %v788 = vsel %vm779, %v769, %v770
        %v789 = vsel %vm779, %v768, %v769
        %v790 = vsel %vm779, %v767, %v768
        %v791 = vsel %vm779, %v766, %v767
        %v792 = vsel %vm779, %v765, %v766
        %v793 = vsel %vm779, %v764, %v765
        %v794 = vsel %vm779, %v763, %v764
        %v795 = vsel %vm779, %v778, %v763
        %s796 = scalar_lea.vmem [#allocation6], 64
        %v797 = vld [vmem:[%s796] sm:$0xff]
        %v798 = vld [vmem:[%s796 + $0x8] sm:$0xff]
        %v799 = vld [vmem:[%s796 + $0x10] sm:$0xff]
        %v800 = vld [vmem:[%s796 + $0x18] sm:$0xff]
        %v802 = vsel %vm376, %v794, 0
        %v805 = vsel %vm376, %v793, 0
        %v808 = vsel %vm376, %v792, 0
        %v811 = vsel %vm376, %v791, 0
        %v814 = vsel %vm376, %v790, 0
        %v817 = vsel %vm376, %v789, 0
        %v820 = vsel %vm376, %v788, 0
        %v823 = vsel %vm376, %v787, 0
        %v826 = vsel %vm376, %v786, 0
        %v829 = vsel %vm376, %v785, 0
        %v832 = vsel %vm376, %v784, 0
        %v835 = vsel %vm376, %v783, 0
        %v838 = vsel %vm376, %v782, 0
        %v841 = vsel %vm376, %v781, 0
        %v844 = vsel %vm376, %v780, 0
        %v847 = vsel %vm376, %v795, 0
        %849 = vmatprep.subr.mxu0 0.0
        %850 = vmatpush1.msra.mxu0 %v797
        %851 = vmatprep.subr.mxu0 0.0
        %852 = vmatpush1.msra.mxu0 %v798
        %853 = vmatprep.subr.mxu0 0.0
        %854 = vmatpush1.msra.mxu0 %v799
        %855 = vmatprep.subr.mxu0 0.0
        %856 = vmatpush1.msra.mxu0 %v800
        %857 = vmatprep.subr.mxu0 0.0
        %858 = vmatpush1.msra.mxu0 0.0
        %859 = vmatprep.subr.mxu0 0.0
        %860 = vmatpush1.msra.mxu0 0.0
        %861 = vmatprep.subr.mxu0 0.0
        %862 = vmatpush1.msra.mxu0 0.0
        %863 = vmatprep.subr.mxu0 0.0
        %864 = vmatpush1.msra.mxu0 0.0
        %865 = vmatprep.subr.mxu0 0.0
        %866 = vmatpush1.msra.mxu0 0.0
        %867 = vmatprep.subr.mxu0 0.0
        %868 = vmatpush1.msra.mxu0 0.0
        %869 = vmatprep.subr.mxu0 0.0
        %870 = vmatpush1.msra.mxu0 0.0
        %871 = vmatprep.subr.mxu0 0.0
        %872 = vmatpush1.msra.mxu0 0.0
        %873 = vmatprep.subr.mxu0 0.0
        %874 = vmatpush1.msra.mxu0 0.0
        %875 = vmatprep.subr.mxu0 0.0
        %876 = vmatpush1.msra.mxu0 0.0
        %877 = vmatprep.subr.mxu0 0.0
        %878 = vmatpush1.msra.mxu0 0.0
        %879 = vmatprep.subr.mxu0 0.0
        %880 = vmatpush1.msra.mxu0 0.0
        %881 = vmatprep.subr.mxu0 0.0
        %882 = vmatpush1.msra.mxu0 0.0
        %883 = vmatprep.subr.mxu0 0.0
        %884 = vmatpush1.msra.mxu0 0.0
        %885 = vmatprep.subr.mxu0 0.0
        %886 = vmatpush1.msra.mxu0 0.0
        %887 = vmatprep.subr.mxu0 0.0
        %888 = vmatpush1.msra.mxu0 0.0
        %889 = vmatprep.subr.mxu0 0.0
        %890 = vmatpush1.msra.mxu0 0.0
        %891 = vmatprep.subr.mxu0 0.0
        %892 = vmatpush1.msra.mxu0 0.0
        %893 = vmatprep.subr.mxu0 0.0
        %894 = vmatpush1.msra.mxu0 0.0
        %895 = vmatprep.subr.mxu0 0.0
        %896 = vmatpush1.msra.mxu0 0.0
        %897 = vmatprep.subr.mxu0 0.0
        %898 = vmatpush1.msra.mxu0 0.0
        %899 = vmatprep.subr.mxu0 0.0
        %900 = vmatpush1.msra.mxu0 0.0
        %901 = vmatprep.subr.mxu0 0.0
        %902 = vmatpush1.msra.mxu0 0.0
        %903 = vmatprep.subr.mxu0 0.0
        %904 = vmatpush1.msra.mxu0 0.0
        %905 = vmatprep.subr.mxu0 0.0
        %906 = vmatpush1.msra.mxu0 0.0
        %907 = vmatprep.subr.mxu0 0.0
        %908 = vmatpush1.msra.mxu0 0.0
        %909 = vmatprep.subr.mxu0 0.0
        %910 = vmatpush1.msra.mxu0 0.0
        %911 = vmatprep.subr.mxu0 0.0
        %912 = vmatpush1.msra.mxu0 0.0
        %913 = vmatprep.mubr.f32.mxu0 0.0
        %914 = vmatmul.mubr.f32.gmra.mrb[0].mxu0 %v802
        %v915 = vpop.f32.mrb[0].mxu0
        %v916 = vadd.f32 0.0, %v915
        %v917 = vpop.f32.mrb[0].mxu0
        %918 = vmatprep.mubr.f32.mxu0 0.0
        %919 = vmatmul.mubr.f32.gmra.mrb[0].mxu0 %v805
        %v920 = vpop.f32.mrb[0].mxu0
        %v921 = vadd.f32 0.0, %v920
        %v922 = vpop.f32.mrb[0].mxu0
        %923 = vmatprep.mubr.f32.mxu0 0.0
        %924 = vmatmul.mubr.f32.gmra.mrb[0].mxu0 %v808
        %v925 = vpop.f32.mrb[0].mxu0
        %v926 = vadd.f32 0.0, %v925
        %v927 = vpop.f32.mrb[0].mxu0
        %928 = vmatprep.mubr.f32.mxu0 0.0
        %929 = vmatmul.mubr.f32.gmra.mrb[0].mxu0 %v811
        %v930 = vpop.f32.mrb[0].mxu0
        %v931 = vadd.f32 0.0, %v930
        %v932 = vpop.f32.mrb[0].mxu0
        %933 = vmatprep.mubr.f32.mxu0 0.0
        %934 = vmatmul.mubr.f32.gmra.mrb[0].mxu0 %v814
        %v935 = vpop.f32.mrb[0].mxu0
        %v936 = vadd.f32 0.0, %v935
        %v937 = vpop.f32.mrb[0].mxu0
        %938 = vmatprep.mubr.f32.mxu0 0.0
        %939 = vmatmul.mubr.f32.gmra.mrb[0].mxu0 %v817
        %v940 = vpop.f32.mrb[0].mxu0
        %v941 = vadd.f32 0.0, %v940
        %v942 = vpop.f32.mrb[0].mxu0
        %943 = vmatprep.mubr.f32.mxu0 0.0
        %944 = vmatmul.mubr.f32.gmra.mrb[0].mxu0 %v820
        %v945 = vpop.f32.mrb[0].mxu0
        %v946 = vadd.f32 0.0, %v945
        %v947 = vpop.f32.mrb[0].mxu0
        %948 = vmatprep.mubr.f32.mxu0 0.0
        %949 = vmatmul.mubr.f32.gmra.mrb[0].mxu0 %v823
        %v950 = vpop.f32.mrb[0].mxu0
        %v951 = vadd.f32 0.0, %v950
        %v952 = vpop.f32.mrb[0].mxu0
        %953 = vmatprep.mubr.f32.mxu0 0.0
        %954 = vmatmul.mubr.f32.gmra.mrb[0].mxu0 %v826
        %v955 = vpop.f32.mrb[0].mxu0
        %v956 = vadd.f32 0.0, %v955
        %v957 = vpop.f32.mrb[0].mxu0
        %958 = vmatprep.mubr.f32.mxu0 0.0
        %959 = vmatmul.mubr.f32.gmra.mrb[0].mxu0 %v829
        %v960 = vpop.f32.mrb[0].mxu0
        %v961 = vadd.f32 0.0, %v960
        %v962 = vpop.f32.mrb[0].mxu0
        %963 = vmatprep.mubr.f32.mxu0 0.0
        %964 = vmatmul.mubr.f32.gmra.mrb[0].mxu0 %v832
        %v965 = vpop.f32.mrb[0].mxu0
        %v966 = vadd.f32 0.0, %v965
        %v967 = vpop.f32.mrb[0].mxu0
        %968 = vmatprep.mubr.f32.mxu0 0.0
        %969 = vmatmul.mubr.f32.gmra.mrb[0].mxu0 %v835
        %v970 = vpop.f32.mrb[0].mxu0
        %v971 = vadd.f32 0.0, %v970
        %v972 = vpop.f32.mrb[0].mxu0
        %973 = vmatprep.mubr.f32.mxu0 0.0
        %974 = vmatmul.mubr.f32.gmra.mrb[0].mxu0 %v838
        %v975 = vpop.f32.mrb[0].mxu0
        %v976 = vadd.f32 0.0, %v975
        %v977 = vpop.f32.mrb[0].mxu0
        %978 = vmatprep.mubr.f32.mxu0 0.0
        %979 = vmatmul.mubr.f32.gmra.mrb[0].mxu0 %v841
        %v980 = vpop.f32.mrb[0].mxu0
        %v981 = vadd.f32 0.0, %v980
        %v982 = vpop.f32.mrb[0].mxu0
        %983 = vmatprep.mubr.f32.mxu0 0.0
        %984 = vmatmul.mubr.f32.gmra.mrb[0].mxu0 %v844
        %v985 = vpop.f32.mrb[0].mxu0
        %v986 = vadd.f32 0.0, %v985
        %v987 = vpop.f32.mrb[0].mxu0
        %988 = vmatprep.mubr.f32.mxu0 0.0
        %989 = vmatmul.mubr.f32.gmra.mrb[0].mxu0 %v847
        %v990 = vpop.f32.mrb[0].mxu0
        %v991 = vadd.f32 0.0, %v990
        %v992 = vpop.f32.mrb[0].mxu0
        %993 = vdwg.mxu0
        %v994 = vadd.f32 %v685, %v916
        %v995 = vadd.f32 %v690, %v921
        %v996 = vadd.f32 %v695, %v926
        %v997 = vadd.f32 %v700, %v931
        %v998 = vadd.f32 %v705, %v936
        %v999 = vadd.f32 %v710, %v941
        %v1000 = vadd.f32 %v715, %v946
        %v1001 = vadd.f32 %v720, %v951
        %v1002 = vadd.f32 %v725, %v956
        %v1003 = vadd.f32 %v730, %v961
        %v1004 = vadd.f32 %v735, %v966
        %v1005 = vadd.f32 %v740, %v971
        %v1006 = vadd.f32 %v745, %v976
        %v1007 = vadd.f32 %v750, %v981
        %v1008 = vadd.f32 %v755, %v986
        %v1009 = vadd.f32 %v760, %v991
        %v1010 = vrot.slane %v316, 3
        %v1011 = vrot.slane %v317, 3
        %v1012 = vrot.slane %v318, 3
        %v1013 = vrot.slane %v319, 3
        %v1014 = vrot.slane %v320, 3
        %v1015 = vrot.slane %v321, 3
        %v1016 = vrot.slane %v322, 3
        %v1017 = vrot.slane %v323, 3
        %v1018 = vrot.slane %v324, 3
        %v1019 = vrot.slane %v325, 3
        %v1020 = vrot.slane %v326, 3
        %v1021 = vrot.slane %v327, 3
        %v1022 = vrot.slane %v328, 3
        %v1023 = vrot.slane %v329, 3
        %v1024 = vrot.slane %v330, 3
        %v1025 = vrot.slane %v331, 3
        %vm1026 = vcmp.lt.s32.totalorder %v353, 5
        %v1027 = vsel %vm1026, %v1024, %v1025
        %v1028 = vsel %vm1026, %v1023, %v1024
        %v1029 = vsel %vm1026, %v1022, %v1023
        %v1030 = vsel %vm1026, %v1021, %v1022
        %v1031 = vsel %vm1026, %v1020, %v1021
        %v1032 = vsel %vm1026, %v1019, %v1020
        %v1033 = vsel %vm1026, %v1018, %v1019
        %v1034 = vsel %vm1026, %v1017, %v1018
        %v1035 = vsel %vm1026, %v1016, %v1017
        %v1036 = vsel %vm1026, %v1015, %v1016
        %v1037 = vsel %vm1026, %v1014, %v1015
        %v1038 = vsel %vm1026, %v1013, %v1014
        %v1039 = vsel %vm1026, %v1012, %v1013
        %v1040 = vsel %vm1026, %v1011, %v1012
        %v1041 = vsel %vm1026, %v1010, %v1011
        %v1042 = vsel %vm1026, %v1025, %v1010
        %s1043 = scalar_lea.vmem [#allocation6], 96
        %v1044 = vld [vmem:[%s1043] sm:$0xff]
        %v1045 = vld [vmem:[%s1043 + $0x8] sm:$0xff]
        %v1046 = vld [vmem:[%s1043 + $0x10] sm:$0xff]
        %v1047 = vld [vmem:[%s1043 + $0x18] sm:$0xff]
        %v1049 = vsel %vm376, %v1041, 0
        %v1052 = vsel %vm376, %v1040, 0
        %v1055 = vsel %vm376, %v1039, 0
        %v1058 = vsel %vm376, %v1038, 0
        %v1061 = vsel %vm376, %v1037, 0
        %v1064 = vsel %vm376, %v1036, 0
        %v1067 = vsel %vm376, %v1035, 0
        %v1070 = vsel %vm376, %v1034, 0
        %v1073 = vsel %vm376, %v1033, 0
        %v1076 = vsel %vm376, %v1032, 0
        %v1079 = vsel %vm376, %v1031, 0
        %v1082 = vsel %vm376, %v1030, 0
        %v1085 = vsel %vm376, %v1029, 0
        %v1088 = vsel %vm376, %v1028, 0
        %v1091 = vsel %vm376, %v1027, 0
        %v1094 = vsel %vm376, %v1042, 0
        %1096 = vmatprep.subr.mxu0 0.0
        %1097 = vmatpush1.msra.mxu0 %v1044
        %1098 = vmatprep.subr.mxu0 0.0
        %1099 = vmatpush1.msra.mxu0 %v1045
        %1100 = vmatprep.subr.mxu0 0.0
        %1101 = vmatpush1.msra.mxu0 %v1046
        %1102 = vmatprep.subr.mxu0 0.0
        %1103 = vmatpush1.msra.mxu0 %v1047
        %1104 = vmatprep.subr.mxu0 0.0
        %1105 = vmatpush1.msra.mxu0 0.0
        %1106 = vmatprep.subr.mxu0 0.0
        %1107 = vmatpush1.msra.mxu0 0.0
        %1108 = vmatprep.subr.mxu0 0.0
        %1109 = vmatpush1.msra.mxu0 0.0
        %1110 = vmatprep.subr.mxu0 0.0
        %1111 = vmatpush1.msra.mxu0 0.0
        %1112 = vmatprep.subr.mxu0 0.0
        %1113 = vmatpush1.msra.mxu0 0.0
        %1114 = vmatprep.subr.mxu0 0.0
        %1115 = vmatpush1.msra.mxu0 0.0
        %1116 = vmatprep.subr.mxu0 0.0
        %1117 = vmatpush1.msra.mxu0 0.0
        %1118 = vmatprep.subr.mxu0 0.0
        %1119 = vmatpush1.msra.mxu0 0.0
        %1120 = vmatprep.subr.mxu0 0.0
        %1121 = vmatpush1.msra.mxu0 0.0
        %1122 = vmatprep.subr.mxu0 0.0
        %1123 = vmatpush1.msra.mxu0 0.0
        %1124 = vmatprep.subr.mxu0 0.0
        %1125 = vmatpush1.msra.mxu0 0.0
        %1126 = vmatprep.subr.mxu0 0.0
        %1127 = vmatpush1.msra.mxu0 0.0
        %1128 = vmatprep.subr.mxu0 0.0
        %1129 = vmatpush1.msra.mxu0 0.0
        %1130 = vmatprep.subr.mxu0 0.0
        %1131 = vmatpush1.msra.mxu0 0.0
        %1132 = vmatprep.subr.mxu0 0.0
        %1133 = vmatpush1.msra.mxu0 0.0
        %1134 = vmatprep.subr.mxu0 0.0
        %1135 = vmatpush1.msra.mxu0 0.0
        %1136 = vmatprep.subr.mxu0 0.0
        %1137 = vmatpush1.msra.mxu0 0.0
        %1138 = vmatprep.subr.mxu0 0.0
        %1139 = vmatpush1.msra.mxu0 0.0
        %1140 = vmatprep.subr.mxu0 0.0
        %1141 = vmatpush1.msra.mxu0 0.0
        %1142 = vmatprep.subr.mxu0 0.0
        %1143 = vmatpush1.msra.mxu0 0.0
        %1144 = vmatprep.subr.mxu0 0.0
        %1145 = vmatpush1.msra.mxu0 0.0
        %1146 = vmatprep.subr.mxu0 0.0
        %1147 = vmatpush1.msra.mxu0 0.0
        %1148 = vmatprep.subr.mxu0 0.0
        %1149 = vmatpush1.msra.mxu0 0.0
        %1150 = vmatprep.subr.mxu0 0.0
        %1151 = vmatpush1.msra.mxu0 0.0
        %1152 = vmatprep.subr.mxu0 0.0
        %1153 = vmatpush1.msra.mxu0 0.0
        %1154 = vmatprep.subr.mxu0 0.0
        %1155 = vmatpush1.msra.mxu0 0.0
        %1156 = vmatprep.subr.mxu0 0.0
        %1157 = vmatpush1.msra.mxu0 0.0
        %1158 = vmatprep.subr.mxu0 0.0
        %1159 = vmatpush1.msra.mxu0 0.0
        %1160 = vmatprep.mubr.f32.mxu0 0.0
        %1161 = vmatmul.mubr.f32.gmra.mrb[0].mxu0 %v1049
        %v1162 = vpop.f32.mrb[0].mxu0
        %v1163 = vadd.f32 0.0, %v1162
        %v1164 = vpop.f32.mrb[0].mxu0
        %1165 = vmatprep.mubr.f32.mxu0 0.0
        %1166 = vmatmul.mubr.f32.gmra.mrb[0].mxu0 %v1052
        %v1167 = vpop.f32.mrb[0].mxu0
        %v1168 = vadd.f32 0.0, %v1167
        %v1169 = vpop.f32.mrb[0].mxu0
        %1170 = vmatprep.mubr.f32.mxu0 0.0
        %1171 = vmatmul.mubr.f32.gmra.mrb[0].mxu0 %v1055
        %v1172 = vpop.f32.mrb[0].mxu0
        %v1173 = vadd.f32 0.0, %v1172
        %v1174 = vpop.f32.mrb[0].mxu0
        %1175 = vmatprep.mubr.f32.mxu0 0.0
        %1176 = vmatmul.mubr.f32.gmra.mrb[0].mxu0 %v1058
        %v1177 = vpop.f32.mrb[0].mxu0
        %v1178 = vadd.f32 0.0, %v1177
        %v1179 = vpop.f32.mrb[0].mxu0
        %1180 = vmatprep.mubr.f32.mxu0 0.0
        %1181 = vmatmul.mubr.f32.gmra.mrb[0].mxu0 %v1061
        %v1182 = vpop.f32.mrb[0].mxu0
        %v1183 = vadd.f32 0.0, %v1182
        %v1184 = vpop.f32.mrb[0].mxu0
        %1185 = vmatprep.mubr.f32.mxu0 0.0
        %1186 = vmatmul.mubr.f32.gmra.mrb[0].mxu0 %v1064
        %v1187 = vpop.f32.mrb[0].mxu0
        %v1188 = vadd.f32 0.0, %v1187
        %v1189 = vpop.f32.mrb[0].mxu0
        %1190 = vmatprep.mubr.f32.mxu0 0.0
        %1191 = vmatmul.mubr.f32.gmra.mrb[0].mxu0 %v1067
        %v1192 = vpop.f32.mrb[0].mxu0
        %v1193 = vadd.f32 0.0, %v1192
        %v1194 = vpop.f32.mrb[0].mxu0
        %1195 = vmatprep.mubr.f32.mxu0 0.0
        %1196 = vmatmul.mubr.f32.gmra.mrb[0].mxu0 %v1070
        %v1197 = vpop.f32.mrb[0].mxu0
        %v1198 = vadd.f32 0.0, %v1197
        %v1199 = vpop.f32.mrb[0].mxu0
        %1200 = vmatprep.mubr.f32.mxu0 0.0
        %1201 = vmatmul.mubr.f32.gmra.mrb[0].mxu0 %v1073
        %v1202 = vpop.f32.mrb[0].mxu0
        %v1203 = vadd.f32 0.0, %v1202
        %v1204 = vpop.f32.mrb[0].mxu0
        %1205 = vmatprep.mubr.f32.mxu0 0.0
        %1206 = vmatmul.mubr.f32.gmra.mrb[0].mxu0 %v1076
        %v1207 = vpop.f32.mrb[0].mxu0
        %v1208 = vadd.f32 0.0, %v1207
        %v1209 = vpop.f32.mrb[0].mxu0
        %1210 = vmatprep.mubr.f32.mxu0 0.0
        %1211 = vmatmul.mubr.f32.gmra.mrb[0].mxu0 %v1079
        %v1212 = vpop.f32.mrb[0].mxu0
        %v1213 = vadd.f32 0.0, %v1212
        %v1214 = vpop.f32.mrb[0].mxu0
        %1215 = vmatprep.mubr.f32.mxu0 0.0
        %1216 = vmatmul.mubr.f32.gmra.mrb[0].mxu0 %v1082
        %v1217 = vpop.f32.mrb[0].mxu0
        %v1218 = vadd.f32 0.0, %v1217
        %v1219 = vpop.f32.mrb[0].mxu0
        %1220 = vmatprep.mubr.f32.mxu0 0.0
        %1221 = vmatmul.mubr.f32.gmra.mrb[0].mxu0 %v1085
        %v1222 = vpop.f32.mrb[0].mxu0
        %v1223 = vadd.f32 0.0, %v1222
        %v1224 = vpop.f32.mrb[0].mxu0
        %1225 = vmatprep.mubr.f32.mxu0 0.0
        %1226 = vmatmul.mubr.f32.gmra.mrb[0].mxu0 %v1088
        %v1227 = vpop.f32.mrb[0].mxu0
        %v1228 = vadd.f32 0.0, %v1227
        %v1229 = vpop.f32.mrb[0].mxu0
        %1230 = vmatprep.mubr.f32.mxu0 0.0
        %1231 = vmatmul.mubr.f32.gmra.mrb[0].mxu0 %v1091
        %v1232 = vpop.f32.mrb[0].mxu0
        %v1233 = vadd.f32 0.0, %v1232
        %v1234 = vpop.f32.mrb[0].mxu0
        %1235 = vmatprep.mubr.f32.mxu0 0.0
        %1236 = vmatmul.mubr.f32.gmra.mrb[0].mxu0 %v1094
        %v1237 = vpop.f32.mrb[0].mxu0
        %v1238 = vadd.f32 0.0, %v1237
        %v1239 = vpop.f32.mrb[0].mxu0
        %1240 = vdwg.mxu0
        %v1241 = vadd.f32 %v994, %v1163
        %v1242 = vadd.f32 %v995, %v1168
        %v1243 = vadd.f32 %v996, %v1173
        %v1244 = vadd.f32 %v997, %v1178
        %v1245 = vadd.f32 %v998, %v1183
        %v1246 = vadd.f32 %v999, %v1188
        %v1247 = vadd.f32 %v1000, %v1193
        %v1248 = vadd.f32 %v1001, %v1198
        %v1249 = vadd.f32 %v1002, %v1203
        %v1250 = vadd.f32 %v1003, %v1208
        %v1251 = vadd.f32 %v1004, %v1213
        %v1252 = vadd.f32 %v1005, %v1218
        %v1253 = vadd.f32 %v1006, %v1223
        %v1254 = vadd.f32 %v1007, %v1228
        %v1255 = vadd.f32 %v1008, %v1233
        %v1256 = vadd.f32 %v1009, %v1238
        %v1257 = vrot.slane %v316, 4
        %v1258 = vrot.slane %v317, 4
        %v1259 = vrot.slane %v318, 4
        %v1260 = vrot.slane %v319, 4
        %v1261 = vrot.slane %v320, 4
        %v1262 = vrot.slane %v321, 4
        %v1263 = vrot.slane %v322, 4
        %v1264 = vrot.slane %v323, 4
        %v1265 = vrot.slane %v324, 4
        %v1266 = vrot.slane %v325, 4
        %v1267 = vrot.slane %v326, 4
        %v1268 = vrot.slane %v327, 4
        %v1269 = vrot.slane %v328, 4
        %v1270 = vrot.slane %v329, 4
        %v1271 = vrot.slane %v330, 4
        %v1272 = vrot.slane %v331, 4
        %vm1273 = vcmp.lt.s32.totalorder %v353, 4
        %v1274 = vsel %vm1273, %v1271, %v1272
        %v1275 = vsel %vm1273, %v1270, %v1271
        %v1276 = vsel %vm1273, %v1269, %v1270
        %v1277 = vsel %vm1273, %v1268, %v1269
        %v1278 = vsel %vm1273, %v1267, %v1268
        %v1279 = vsel %vm1273, %v1266, %v1267
        %v1280 = vsel %vm1273, %v1265, %v1266
        %v1281 = vsel %vm1273, %v1264, %v1265
        %v1282 = vsel %vm1273, %v1263, %v1264
        %v1283 = vsel %vm1273, %v1262, %v1263
        %v1284 = vsel %vm1273, %v1261, %v1262
        %v1285 = vsel %vm1273, %v1260, %v1261
        %v1286 = vsel %vm1273, %v1259, %v1260
        %v1287 = vsel %vm1273, %v1258, %v1259
        %v1288 = vsel %vm1273, %v1257, %v1258
        %v1289 = vsel %vm1273, %v1272, %v1257
        %s1290 = scalar_lea.vmem [#allocation6], 128
        %v1291 = vld [vmem:[%s1290] sm:$0xff]
        %v1292 = vld [vmem:[%s1290 + $0x8] sm:$0xff]
        %v1293 = vld [vmem:[%s1290 + $0x10] sm:$0xff]
        %v1294 = vld [vmem:[%s1290 + $0x18] sm:$0xff]
        %v1296 = vsel %vm376, %v1288, 0
        %v1299 = vsel %vm376, %v1287, 0
        %v1302 = vsel %vm376, %v1286, 0
        %v1305 = vsel %vm376, %v1285, 0
        %v1308 = vsel %vm376, %v1284, 0
        %v1311 = vsel %vm376, %v1283, 0
        %v1314 = vsel %vm376, %v1282, 0
        %v1317 = vsel %vm376, %v1281, 0
        %v1320 = vsel %vm376, %v1280, 0
        %v1323 = vsel %vm376, %v1279, 0
        %v1326 = vsel %vm376, %v1278, 0
        %v1329 = vsel %vm376, %v1277, 0
        %v1332 = vsel %vm376, %v1276, 0
        %v1335 = vsel %vm376, %v1275, 0
        %v1338 = vsel %vm376, %v1274, 0
        %v1341 = vsel %vm376, %v1289, 0
        %1343 = vmatprep.subr.mxu0 0.0
        %1344 = vmatpush1.msra.mxu0 %v1291
        %1345 = vmatprep.subr.mxu0 0.0
        %1346 = vmatpush1.msra.mxu0 %v1292
        %1347 = vmatprep.subr.mxu0 0.0
        %1348 = vmatpush1.msra.mxu0 %v1293
        %1349 = vmatprep.subr.mxu0 0.0
        %1350 = vmatpush1.msra.mxu0 %v1294
        %1351 = vmatprep.subr.mxu0 0.0
        %1352 = vmatpush1.msra.mxu0 0.0
        %1353 = vmatprep.subr.mxu0 0.0
        %1354 = vmatpush1.msra.mxu0 0.0
        %1355 = vmatprep.subr.mxu0 0.0
        %1356 = vmatpush1.msra.mxu0 0.0
        %1357 = vmatprep.subr.mxu0 0.0
        %1358 = vmatpush1.msra.mxu0 0.0
        %1359 = vmatprep.subr.mxu0 0.0
        %1360 = vmatpush1.msra.mxu0 0.0
        %1361 = vmatprep.subr.mxu0 0.0
        %1362 = vmatpush1.msra.mxu0 0.0
        %1363 = vmatprep.subr.mxu0 0.0
        %1364 = vmatpush1.msra.mxu0 0.0
        %1365 = vmatprep.subr.mxu0 0.0
        %1366 = vmatpush1.msra.mxu0 0.0
        %1367 = vmatprep.subr.mxu0 0.0
        %1368 = vmatpush1.msra.mxu0 0.0
        %1369 = vmatprep.subr.mxu0 0.0
        %1370 = vmatpush1.msra.mxu0 0.0
        %1371 = vmatprep.subr.mxu0 0.0
        %1372 = vmatpush1.msra.mxu0 0.0
        %1373 = vmatprep.subr.mxu0 0.0
        %1374 = vmatpush1.msra.mxu0 0.0
        %1375 = vmatprep.subr.mxu0 0.0
        %1376 = vmatpush1.msra.mxu0 0.0
        %1377 = vmatprep.subr.mxu0 0.0
        %1378 = vmatpush1.msra.mxu0 0.0
        %1379 = vmatprep.subr.mxu0 0.0
        %1380 = vmatpush1.msra.mxu0 0.0
        %1381 = vmatprep.subr.mxu0 0.0
        %1382 = vmatpush1.msra.mxu0 0.0
        %1383 = vmatprep.subr.mxu0 0.0
        %1384 = vmatpush1.msra.mxu0 0.0
        %1385 = vmatprep.subr.mxu0 0.0
        %1386 = vmatpush1.msra.mxu0 0.0
        %1387 = vmatprep.subr.mxu0 0.0
        %1388 = vmatpush1.msra.mxu0 0.0
        %1389 = vmatprep.subr.mxu0 0.0
        %1390 = vmatpush1.msra.mxu0 0.0
        %1391 = vmatprep.subr.mxu0 0.0
        %1392 = vmatpush1.msra.mxu0 0.0
        %1393 = vmatprep.subr.mxu0 0.0
        %1394 = vmatpush1.msra.mxu0 0.0
        %1395 = vmatprep.subr.mxu0 0.0
        %1396 = vmatpush1.msra.mxu0 0.0
        %1397 = vmatprep.subr.mxu0 0.0
        %1398 = vmatpush1.msra.mxu0 0.0
        %1399 = vmatprep.subr.mxu0 0.0
        %1400 = vmatpush1.msra.mxu0 0.0
        %1401 = vmatprep.subr.mxu0 0.0
        %1402 = vmatpush1.msra.mxu0 0.0
        %1403 = vmatprep.subr.mxu0 0.0
        %1404 = vmatpush1.msra.mxu0 0.0
        %1405 = vmatprep.subr.mxu0 0.0
        %1406 = vmatpush1.msra.mxu0 0.0
        %1407 = vmatprep.mubr.f32.mxu0 0.0
        %1408 = vmatmul.mubr.f32.gmra.mrb[0].mxu0 %v1296
        %v1409 = vpop.f32.mrb[0].mxu0
        %v1410 = vadd.f32 0.0, %v1409
        %v1411 = vpop.f32.mrb[0].mxu0
        %1412 = vmatprep.mubr.f32.mxu0 0.0
        %1413 = vmatmul.mubr.f32.gmra.mrb[0].mxu0 %v1299
        %v1414 = vpop.f32.mrb[0].mxu0
        %v1415 = vadd.f32 0.0, %v1414
        %v1416 = vpop.f32.mrb[0].mxu0
        %1417 = vmatprep.mubr.f32.mxu0 0.0
        %1418 = vmatmul.mubr.f32.gmra.mrb[0].mxu0 %v1302
        %v1419 = vpop.f32.mrb[0].mxu0
        %v1420 = vadd.f32 0.0, %v1419
        %v1421 = vpop.f32.mrb[0].mxu0
        %1422 = vmatprep.mubr.f32.mxu0 0.0
        %1423 = vmatmul.mubr.f32.gmra.mrb[0].mxu0 %v1305
        %v1424 = vpop.f32.mrb[0].mxu0
        %v1425 = vadd.f32 0.0, %v1424
        %v1426 = vpop.f32.mrb[0].mxu0
        %1427 = vmatprep.mubr.f32.mxu0 0.0
        %1428 = vmatmul.mubr.f32.gmra.mrb[0].mxu0 %v1308
        %v1429 = vpop.f32.mrb[0].mxu0
        %v1430 = vadd.f32 0.0, %v1429
        %v1431 = vpop.f32.mrb[0].mxu0
        %1432 = vmatprep.mubr.f32.mxu0 0.0
        %1433 = vmatmul.mubr.f32.gmra.mrb[0].mxu0 %v1311
        %v1434 = vpop.f32.mrb[0].mxu0
        %v1435 = vadd.f32 0.0, %v1434
        %v1436 = vpop.f32.mrb[0].mxu0
        %1437 = vmatprep.mubr.f32.mxu0 0.0
        %1438 = vmatmul.mubr.f32.gmra.mrb[0].mxu0 %v1314
        %v1439 = vpop.f32.mrb[0].mxu0
        %v1440 = vadd.f32 0.0, %v1439
        %v1441 = vpop.f32.mrb[0].mxu0
        %1442 = vmatprep.mubr.f32.mxu0 0.0
        %1443 = vmatmul.mubr.f32.gmra.mrb[0].mxu0 %v1317
        %v1444 = vpop.f32.mrb[0].mxu0
        %v1445 = vadd.f32 0.0, %v1444
        %v1446 = vpop.f32.mrb[0].mxu0
        %1447 = vmatprep.mubr.f32.mxu0 0.0
        %1448 = vmatmul.mubr.f32.gmra.mrb[0].mxu0 %v1320
        %v1449 = vpop.f32.mrb[0].mxu0
        %v1450 = vadd.f32 0.0, %v1449
        %v1451 = vpop.f32.mrb[0].mxu0
        %1452 = vmatprep.mubr.f32.mxu0 0.0
        %1453 = vmatmul.mubr.f32.gmra.mrb[0].mxu0 %v1323
        %v1454 = vpop.f32.mrb[0].mxu0
        %v1455 = vadd.f32 0.0, %v1454
        %v1456 = vpop.f32.mrb[0].mxu0
        %1457 = vmatprep.mubr.f32.mxu0 0.0
        %1458 = vmatmul.mubr.f32.gmra.mrb[0].mxu0 %v1326
        %v1459 = vpop.f32.mrb[0].mxu0
        %v1460 = vadd.f32 0.0, %v1459
        %v1461 = vpop.f32.mrb[0].mxu0
        %1462 = vmatprep.mubr.f32.mxu0 0.0
        %1463 = vmatmul.mubr.f32.gmra.mrb[0].mxu0 %v1329
        %v1464 = vpop.f32.mrb[0].mxu0
        %v1465 = vadd.f32 0.0, %v1464
        %v1466 = vpop.f32.mrb[0].mxu0
        %1467 = vmatprep.mubr.f32.mxu0 0.0
        %1468 = vmatmul.mubr.f32.gmra.mrb[0].mxu0 %v1332
        %v1469 = vpop.f32.mrb[0].mxu0
        %v1470 = vadd.f32 0.0, %v1469
        %v1471 = vpop.f32.mrb[0].mxu0
        %1472 = vmatprep.mubr.f32.mxu0 0.0
        %1473 = vmatmul.mubr.f32.gmra.mrb[0].mxu0 %v1335
        %v1474 = vpop.f32.mrb[0].mxu0
        %v1475 = vadd.f32 0.0, %v1474
        %v1476 = vpop.f32.mrb[0].mxu0
        %1477 = vmatprep.mubr.f32.mxu0 0.0
        %1478 = vmatmul.mubr.f32.gmra.mrb[0].mxu0 %v1338
        %v1479 = vpop.f32.mrb[0].mxu0
        %v1480 = vadd.f32 0.0, %v1479
        %v1481 = vpop.f32.mrb[0].mxu0
        %1482 = vmatprep.mubr.f32.mxu0 0.0
        %1483 = vmatmul.mubr.f32.gmra.mrb[0].mxu0 %v1341
        %v1484 = vpop.f32.mrb[0].mxu0
        %v1485 = vadd.f32 0.0, %v1484
        %v1486 = vpop.f32.mrb[0].mxu0
        %1487 = vdwg.mxu0
        %v1488 = vadd.f32 %v1241, %v1410
        %v1489 = vadd.f32 %v1242, %v1415
        %v1490 = vadd.f32 %v1243, %v1420
        %v1491 = vadd.f32 %v1244, %v1425
        %v1492 = vadd.f32 %v1245, %v1430
        %v1493 = vadd.f32 %v1246, %v1435
        %v1494 = vadd.f32 %v1247, %v1440
        %v1495 = vadd.f32 %v1248, %v1445
        %v1496 = vadd.f32 %v1249, %v1450
        %v1497 = vadd.f32 %v1250, %v1455
        %v1498 = vadd.f32 %v1251, %v1460
        %v1499 = vadd.f32 %v1252, %v1465
        %v1500 = vadd.f32 %v1253, %v1470
        %v1501 = vadd.f32 %v1254, %v1475
        %v1502 = vadd.f32 %v1255, %v1480
        %v1503 = vadd.f32 %v1256, %v1485
        %v1504 = vld [vmem:[#allocation8] sm:$0xff]
        %v1505 = vld [vmem:[#allocation8 + $0x8] sm:$0xff]
        %v1506 = vadd.f32 %v1488, %v1504
        %v1507 = vadd.f32 %v1489, %v1505
        %v1508 = vadd.f32 %v1490, %v1504
        %v1509 = vadd.f32 %v1491, %v1505
        %v1510 = vadd.f32 %v1492, %v1504
        %v1511 = vadd.f32 %v1493, %v1505
        %v1512 = vadd.f32 %v1494, %v1504
        %v1513 = vadd.f32 %v1495, %v1505
        %v1514 = vadd.f32 %v1496, %v1504
        %v1515 = vadd.f32 %v1497, %v1505
        %v1516 = vadd.f32 %v1498, %v1504
        %v1517 = vadd.f32 %v1499, %v1505
        %v1518 = vadd.f32 %v1500, %v1504
        %v1519 = vadd.f32 %v1501, %v1505
        %v1520 = vadd.f32 %v1502, %v1504
        %v1521 = vadd.f32 %v1503, %v1505
        %v1522 = vmax.f32 %v1506, %v1507
        %v1523 = vrot.slane %v1522, 4
        %v1524 = vmax.f32 %v1522, %v1523
        %v1525 = vrot.slane %v1524, 2
        %v1526 = vmax.f32 %v1524, %v1525
        %v1527 = vrot.slane %v1526, 1
        %v1528 = vmax.f32 %v1526, %v1527
        %v1529 = vmax.f32 %v1508, %v1509
        %v1530 = vrot.slane %v1529, 4
        %v1531 = vmax.f32 %v1529, %v1530
        %v1532 = vrot.slane %v1531, 2
        %v1533 = vmax.f32 %v1531, %v1532
        %v1534 = vrot.slane %v1533, 1
        %v1535 = vmax.f32 %v1533, %v1534
        %v1536 = vmax.f32 %v1510, %v1511
        %v1537 = vrot.slane %v1536, 4
        %v1538 = vmax.f32 %v1536, %v1537
        %v1539 = vrot.slane %v1538, 2
        %v1540 = vmax.f32 %v1538, %v1539
        %v1541 = vrot.slane %v1540, 1
        %v1542 = vmax.f32 %v1540, %v1541
        %v1543 = vmax.f32 %v1512, %v1513
        %v1544 = vrot.slane %v1543, 4
        %v1545 = vmax.f32 %v1543, %v1544
        %v1546 = vrot.slane %v1545, 2
        %v1547 = vmax.f32 %v1545, %v1546
        %v1548 = vrot.slane %v1547, 1
        %v1549 = vmax.f32 %v1547, %v1548
        %v1550 = vmax.f32 %v1514, %v1515
        %v1551 = vrot.slane %v1550, 4
        %v1552 = vmax.f32 %v1550, %v1551
        %v1553 = vrot.slane %v1552, 2
        %v1554 = vmax.f32 %v1552, %v1553
        %v1555 = vrot.slane %v1554, 1
        %v1556 = vmax.f32 %v1554, %v1555
        %v1557 = vmax.f32 %v1516, %v1517
        %v1558 = vrot.slane %v1557, 4
        %v1559 = vmax.f32 %v1557, %v1558
        %v1560 = vrot.slane %v1559, 2
        %v1561 = vmax.f32 %v1559, %v1560
        %v1562 = vrot.slane %v1561, 1
        %v1563 = vmax.f32 %v1561, %v1562
        %v1564 = vmax.f32 %v1518, %v1519
        %v1565 = vrot.slane %v1564, 4
        %v1566 = vmax.f32 %v1564, %v1565
        %v1567 = vrot.slane %v1566, 2
        %v1568 = vmax.f32 %v1566, %v1567
        %v1569 = vrot.slane %v1568, 1
        %v1570 = vmax.f32 %v1568, %v1569
        %v1571 = vmax.f32 %v1520, %v1521
        %v1572 = vrot.slane %v1571, 4
        %v1573 = vmax.f32 %v1571, %v1572
        %v1574 = vrot.slane %v1573, 2
        %v1575 = vmax.f32 %v1573, %v1574
        %v1576 = vrot.slane %v1575, 1
        %v1577 = vmax.f32 %v1575, %v1576
        %vm1586 = vcmask 1041409
        %v1587 = vsel %vm1586, %v1535, %v1528
        %vm1588 = vcmask 1042434
        %v1589 = vsel %vm1588, %v1542, %v1587
        %vm1590 = vcmask 1043459
        %v1591 = vsel %vm1590, %v1549, %v1589
        %vm1592 = vcmask 1044484
        %v1593 = vsel %vm1592, %v1556, %v1591
        %vm1594 = vcmask 1045509
        %v1595 = vsel %vm1594, %v1563, %v1593
        %vm1596 = vcmask 1046534
        %v1597 = vsel %vm1596, %v1570, %v1595
        %vm1598 = vcmask 1047559
        %v1599 = vsel %vm1598, %v1577, %v1597
        %1601 = vst [vmem:[#allocation2] sm:$0xff] %v1599
        %v1602 = vld [vmem:[#allocation2] sm:$0xff]
        %v1603 = vld [vmem:[%s3] sm:$0x1]
        %v1605 = vlaneseq
        %v1606 = vshrl.u32 %v1605, 7
        %v1607 = vsub.s32 0, %v1606
        %v1608 = vrot.slane %v1603, %v1607
        %v1610 = vadd.f32 %v1602, %v1608
        %v1611 = vmax.f32 %v1610, 0.0
        %v1612 = vld [vmem:[#allocation9] sm:$0xff]
        %v1613 = vld [vmem:[#allocation9 + $0x8] sm:$0xff]
        %v1614 = vld [vmem:[#allocation9 + $0x10] sm:$0xff]
        %v1615 = vld [vmem:[#allocation9 + $0x18] sm:$0xff]
        %v1616 = vld [vmem:[#allocation9 + $0x20] sm:$0xff]
        %v1617 = vld [vmem:[#allocation9 + $0x28] sm:$0xff]
        %v1618 = vld [vmem:[#allocation9 + $0x30] sm:$0xff]
        %v1619 = vld [vmem:[#allocation9 + $0x38] sm:$0xff]
        %v1620 = vld [vmem:[#allocation9 + $0x40] sm:$0xff]
        %v1621 = vld [vmem:[#allocation9 + $0x48] sm:$0xff]
        %v1622 = vld [vmem:[#allocation9 + $0x50] sm:$0xff]
        %v1623 = vld [vmem:[#allocation9 + $0x58] sm:$0xff]
        %v1624 = vld [vmem:[#allocation9 + $0x60] sm:$0xff]
        %v1625 = vld [vmem:[#allocation9 + $0x68] sm:$0xff]
        %v1626 = vld [vmem:[#allocation9 + $0x70] sm:$0xff]
        %v1627 = vld [vmem:[#allocation9 + $0x78] sm:$0xff]
        %v1628 = vld [vmem:[%s5] sm:$0x1]
        %v1630 = vlaneseq
        %v1631 = vshrl.u32 %v1630, 7
        %v1632 = vsub.s32 0, %v1631
        %v1633 = vrot.slane %v1628, %v1632
        %1635 = vmatprep.subr.mxu0 0.0
        %1636 = vmatpush1.msra.mxu0 %v1612
        %1637 = vmatprep.subr.mxu0 0.0
        %1638 = vmatpush1.msra.mxu0 %v1613
        %1639 = vmatprep.subr.mxu0 0.0
        %1640 = vmatpush1.msra.mxu0 %v1614
        %1641 = vmatprep.subr.mxu0 0.0
        %1642 = vmatpush1.msra.mxu0 %v1615
        %1643 = vmatprep.subr.mxu0 0.0
        %1644 = vmatpush1.msra.mxu0 %v1616
        %1645 = vmatprep.subr.mxu0 0.0
        %1646 = vmatpush1.msra.mxu0 %v1617
        %1647 = vmatprep.subr.mxu0 0.0
        %1648 = vmatpush1.msra.mxu0 %v1618
        %1649 = vmatprep.subr.mxu0 0.0
        %1650 = vmatpush1.msra.mxu0 %v1619
        %1651 = vmatprep.subr.mxu0 0.0
        %1652 = vmatpush1.msra.mxu0 %v1620
        %1653 = vmatprep.subr.mxu0 0.0
        %1654 = vmatpush1.msra.mxu0 %v1621
        %1655 = vmatprep.subr.mxu0 0.0
        %1656 = vmatpush1.msra.mxu0 %v1622
        %1657 = vmatprep.subr.mxu0 0.0
        %1658 = vmatpush1.msra.mxu0 %v1623
        %1659 = vmatprep.subr.mxu0 0.0
        %1660 = vmatpush1.msra.mxu0 %v1624
        %1661 = vmatprep.subr.mxu0 0.0
        %1662 = vmatpush1.msra.mxu0 %v1625
        %1663 = vmatprep.subr.mxu0 0.0
        %1664 = vmatpush1.msra.mxu0 %v1626
        %1665 = vmatprep.subr.mxu0 0.0
        %1666 = vmatpush1.msra.mxu0 %v1627
        %1667 = vmatprep.subr.mxu0 0.0
        %1668 = vmatpush1.msra.mxu0 0.0
        %1669 = vmatprep.subr.mxu0 0.0
        %1670 = vmatpush1.msra.mxu0 0.0
        %1671 = vmatprep.subr.mxu0 0.0
        %1672 = vmatpush1.msra.mxu0 0.0
        %1673 = vmatprep.subr.mxu0 0.0
        %1674 = vmatpush1.msra.mxu0 0.0
        %1675 = vmatprep.subr.mxu0 0.0
        %1676 = vmatpush1.msra.mxu0 0.0
        %1677 = vmatprep.subr.mxu0 0.0
        %1678 = vmatpush1.msra.mxu0 0.0
        %1679 = vmatprep.subr.mxu0 0.0
        %1680 = vmatpush1.msra.mxu0 0.0
        %1681 = vmatprep.subr.mxu0 0.0
        %1682 = vmatpush1.msra.mxu0 0.0
        %1683 = vmatprep.subr.mxu0 0.0
        %1684 = vmatpush1.msra.mxu0 0.0
        %1685 = vmatprep.subr.mxu0 0.0
        %1686 = vmatpush1.msra.mxu0 0.0
        %1687 = vmatprep.subr.mxu0 0.0
        %1688 = vmatpush1.msra.mxu0 0.0
        %1689 = vmatprep.subr.mxu0 0.0
        %1690 = vmatpush1.msra.mxu0 0.0
        %1691 = vmatprep.subr.mxu0 0.0
        %1692 = vmatpush1.msra.mxu0 0.0
        %1693 = vmatprep.subr.mxu0 0.0
        %1694 = vmatpush1.msra.mxu0 0.0
        %1695 = vmatprep.subr.mxu0 0.0
        %1696 = vmatpush1.msra.mxu0 0.0
        %1697 = vmatprep.subr.mxu0 0.0
        %1698 = vmatpush1.msra.mxu0 0.0
        %1699 = vmatprep.mubr.f32.mxu0 0.0
        %1700 = vmatmul.mubr.f32.gmra.mrb[0].mxu0 %v1611
        %v1701 = vpop.f32.mrb[0].mxu0
        %v1702 = vadd.f32 %v1633, %v1701
        %v1703 = vpop.f32.mrb[0].mxu0
        %1704 = vdwg.mxu0
        %1705 = vst [vmem:[%s314] sm:$0xff] %v1702
        %s1706 = sand.u32 %s164, 1
        %s1707 = scalar_lea.sflag [#allocation5], %s1706
        %s1708 = sand.u32 %s164, 1
        %s1709 = smul.addr %s1708, 8
        %s1710 = scalar_lea.vmem [#allocation11], %s1709
        // Predicated region
        $region61: #{tpu_custom_call.1} parent=43 // pred_check
          %p1711 = pneg %p174
        $region62: #{tpu_custom_call.1} parent=43 // pred_check_branch
          %1713 = sbr.rel (%p1711) target = $region64
        $region63: #{tpu_custom_call.1} parent=43 // pred_region
          %s1715 = ssub.s32 128, 128
          %1716 = vsyncadd %s1707, %s1715
          %s1717 = smul.addr %s25, 128
          %s1718 = scalar_lea.hbm %s6, %s1717
          %s1720 = sshll.u32 %s1710, 4
          %s1721 = int_to_ptr.vmem [resolvable:$true] %s1720
          %1723 = dma.vmem_to_hbm [thread:$0]  %s1721, 128, %s1718, %s1707
        $region64: #{tpu_custom_call.1} parent=43 // pred_fallthru
          _
      $region44: #{tpu_custom_call.1} parent=5 // pred_fallthru
        _
      %p1724 = scmp.le.s32.totalorder 2, %s20
      // Predicated region
      $region65: #{tpu_custom_call.1} parent=5 // pred_check
        %p1725 = pneg %p1724
      $region66: #{tpu_custom_call.1} parent=5 // pred_check_branch
        %1727 = sbr.rel (%p1725) target = $region68
      $region67: #{tpu_custom_call.1} parent=5 // pred_region
        %s1728 = ssub.s32 %s20, 2
        // Predicated region
        $region69: #{tpu_custom_call.1} parent=67 // pred_check
          %p1729 = pneg %p180
        $region70: #{tpu_custom_call.1} parent=67 // pred_check_branch
          %1731 = sbr.rel (%p1729) target = $region72
        $region71: #{tpu_custom_call.1} parent=67 // pred_region
          %s1732 = sand.u32 %s165, 1
          %s1733 = scalar_lea.sflag [#allocation5], %s1732
          %s1734 = sand.u32 %s165, 1
          %s1735 = smul.addr %s1734, 8
          %s1736 = scalar_lea.vmem [#allocation11], %s1735
          %1737 = dma.done %s1733, 128
        $region72: #{tpu_custom_call.1} parent=67 // pred_fallthru
          _
      $region68: #{tpu_custom_call.1} parent=5 // pred_fallthru
        _
    $region6: #{tpu_custom_call.1} parent=1 // loop_footer
      %s24 = sadd.s32 1, %s20
    $region7: #{tpu_custom_call.1} parent=1 // loop_footer_branch
      %19 = sbr.rel target = $region3
    $region8: #{tpu_custom_call.1} parent=1 // loop_exit
      _
    %1738 = vsyncpa [#allocation4], 1
    %s1739 = scalar_lea.sflag [#allocation4], 1
    %1740 = vsyncpa %s1739, 1
    %1741 = vsyncpa [#allocation7], 1
    %1742 = vsyncpa [#allocation10], 1
    %1743 = vsyncpa [#allocation5], 1
    %s1744 = scalar_lea.sflag [#allocation5], 1
    %1745 = vsyncpa %s1744, 1

</llo_original>
